<compile_context>
chip_gen: v7x
topology: tpu7x:2x2x1
jax: 0.10.0
libtpu: 0.0.40
codegen_flags: <defaults>
</compile_context>

<pallas_src>
import functools

import jax
import jax.numpy as jnp
from jax.experimental import pallas as pl
from jax.experimental.pallas import tpu as pltpu


def _zoom_cat_kernel(sel_pair_ref, sel_diff_ref, up_ref, l_ref, m_ref, s_ref,
                     o_ref, *, precision):
    # Block shapes (per (batch, channel-tile) grid step):
    #   sel_pair_ref: (2W, W)      0/1 column-pair-sum matrix (resident)
    #   sel_diff_ref: (2W, W)      +1/-1 column-pair-diff matrix (resident)
    #   up_ref:       (W2, W)      0/1 nearest 2x lane-upsample matrix (resident)
    #   l_ref: (1, TC, H, 4W)      large map; row h = [orig row 2h | orig row 2h+1]
    #   m_ref: (1, TC, H, W)       mid map (target resolution)
    #   s_ref: (1, TC, H2, W2)     small map (half resolution)
    #   o_ref: (1, 3, TC, H, W)    output slabs [l_pooled, m, s_upsampled]
    TC, H, W = m_ref.shape[1], m_ref.shape[2], m_ref.shape[3]
    H2, W2 = s_ref.shape[2], s_ref.shape[3]
    out_dtype = o_ref.dtype
    f32 = jnp.float32

    sel_pair = sel_pair_ref[...]
    sel_diff = sel_diff_ref[...]
    up_h = up_ref[...]

    # ---------------- l branch: 2x2 max pool + 2x2 avg pool ----------------
    l_rows = l_ref[0].astype(f32)                 # (TC, H, 4W)
    top = l_rows[:, :, : 2 * W]                   # original rows 2h
    bot = l_rows[:, :, 2 * W:]                    # original rows 2h+1
    v_max = jnp.maximum(top, bot)                 # (TC, H, 2W)
    a = 0.5 * v_max + 0.25 * (top + bot)          # half-max + quarter-sum

    a2 = a.reshape(TC * H, 2 * W)
    vmax2 = v_max.reshape(TC * H, 2 * W)
    # pair[:, j] = a[:, 2j] + a[:, 2j+1]
    pair = jnp.dot(a2, sel_pair, precision=precision, preferred_element_type=f32)
    # diff[:, j] = v_max[:, 2j] - v_max[:, 2j+1]
    diff = jnp.dot(vmax2, sel_diff, precision=precision, preferred_element_type=f32)
    # max(a,b) = 0.5*(a+b) + 0.5*|a-b|  =>  pair + 0.5*|diff| = maxpool + avgpool
    l_out = (pair + 0.5 * jnp.abs(diff)).reshape(TC, H, W)
    o_ref[0, 0, :, :, :] = l_out.astype(out_dtype)

    # ---------------- m branch: passthrough into its concat slot ----------------
    o_ref[0, 1, :, :, :] = m_ref[0]

    # ---------------- s branch: nearest 2x upsample, one dense store ----------------
    s_v = s_ref[0].astype(f32).reshape(TC * H2, W2)
    s_h = jnp.dot(s_v, up_h, precision=precision, preferred_element_type=f32)  # (TC*H2, W)
    s_up = jnp.broadcast_to(s_h[:, None, :], (TC * H2, 2, W)).reshape(TC, H, W)
    o_ref[0, 2, :, :, :] = s_up.astype(out_dtype)


def _vmem_limit_bytes():
    """Generation-aware scoped-VMEM limit with ~25% headroom."""
    cap = None
    try:
        info = pltpu.get_tpu_info()
        cap = getattr(info, "vmem_capacity_bytes", None)
    except Exception:
        cap = None
    if not cap:
        cap = 64 * 1024 * 1024  # conservative: v7x physical VMEM per TensorCore
    return int(cap * 3 // 4)    # 48 MiB on v7x, 96 MiB on v5e/v6e


def _pick_channel_tile(B, C, H, W, H2, W2, itemsize, vmem_budget, min_steps=8):
    """Largest divisor of C whose padded, double-buffered block bytes fit,
    while keeping >= min_steps grid steps (megacore sharding + pipelining)."""
    def padded(r, c):
        return ((r + 7) // 8 * 8) * ((c + 127) // 128 * 128)

    per_ch = (padded(H, 4 * W)        # l block
              + padded(H, W)          # m block
              + padded(H2, W2)        # s block
              + 3 * padded(H, W)      # output block
              ) * itemsize
    per_ch *= 2                       # Pallas double-buffers every block
    cap = max(1, (vmem_budget // 2) // max(1, per_ch))

    steps_needed = -(-min_steps // max(1, B))   # ceil(min_steps / B)
    if C >= steps_needed:
        cap = min(cap, max(1, C // steps_needed))
    cap = min(cap, C)

    # TODO(synk): non-divisor C falls back to the largest divisor (worst case 1);
    # a masked tail / channel padding would avoid tiny tiles for awkward C.
    for t in range(cap, 0, -1):
        if C % t == 0:
            return t
    return 1


def zoom_cat(l, m, s):
    B, C, H, W = m.shape
    assert l.shape == (B, C, 2 * H, 2 * W), "large map must be exactly 2x target size"
    H2, W2 = s.shape[2], s.shape[3]
    assert s.shape == (B, C, H2, W2) and (H, W) == (2 * H2, 2 * W2), \
        "small map must be exactly 0.5x target size"
    # TODO(synk): general (non-integer-ratio) adaptive pooling / nearest-interp
    # target sizes are not expressible as a fixed-window kernel; only the exact
    # 2x / 0.5x pyramid used by ASF-YOLO is implemented.

    dtype = m.dtype
    itemsize = jnp.dtype(dtype).itemsize
    vmem_limit = _vmem_limit_bytes()
    tc = _pick_channel_tile(B, C, H, W, H2, W2, itemsize, vmem_limit)

    # Exact for f32 only with HIGHEST; DEFAULT (single-pass bf16 MXU) is exact
    # for bf16 data with 0/±1 weights and <=2-term sums into an f32 accumulator.
    prec = (jax.lax.Precision.HIGHEST if jnp.dtype(dtype) == jnp.float32
            else jax.lax.Precision.DEFAULT)

    # Free (row-major) reshape: (B,C,2H,2W) -> (B,C,H,4W).  Row h of the new
    # layout is [original row 2h | original row 2h+1] along lanes, so the DMA
    # is dense and the kernel never needs strided/sublane-sliced loads.
    l_r = l.reshape(B, C, H, 4 * W)

    # Tiny constant selection matrices, hoisted out of the kernel body.
    r2 = jnp.arange(2 * W)[:, None]
    c1 = jnp.arange(W)[None, :]
    sel_pair = ((r2 // 2) == c1).astype(jnp.float32)                       # (2W, W)
    sel_diff = ((r2 == 2 * c1).astype(jnp.float32)
                - (r2 == 2 * c1 + 1).astype(jnp.float32))                  # (2W, W)
    r_half = jnp.arange(W2)[:, None]
    up_h = ((c1 // 2) == r_half).astype(jnp.float32)                       # (W2, W)

    bytes_accessed = B * C * (4 * H * W + H * W + H2 * W2 + 3 * H * W) * itemsize
    cost = pl.CostEstimate(
        flops=int(B * C * H * W * (8 * W + 2 * W2 + 8)),
        transcendentals=0,
        bytes_accessed=int(bytes_accessed),
    )

    kernel = functools.partial(_zoom_cat_kernel, precision=prec)

    out5 = pl.pallas_call(
        kernel,
        out_shape=jax.ShapeDtypeStruct((B, 3, C, H, W), dtype),
        grid_spec=pltpu.PrefetchScalarGridSpec(
            num_scalar_prefetch=0,
            grid=(B, C // tc),
            in_specs=[
                # Constant blocks: fetched once, stay resident across steps.
                pl.BlockSpec((2 * W, W), lambda b, c: (0, 0)),
                pl.BlockSpec((2 * W, W), lambda b, c: (0, 0)),
                pl.BlockSpec((W2, W), lambda b, c: (0, 0)),
                # Streaming blocks.
                pl.BlockSpec((1, tc, H, 4 * W), lambda b, c: (b, c, 0, 0)),
                pl.BlockSpec((1, tc, H, W), lambda b, c: (b, c, 0, 0)),
                pl.BlockSpec((1, tc, H2, W2), lambda b, c: (b, c, 0, 0)),
            ],
            out_specs=pl.BlockSpec((1, 3, tc, H, W), lambda b, c: (b, 0, c, 0, 0)),
        ),
        compiler_params=pltpu.CompilerParams(
            dimension_semantics=("parallel", "parallel"),
            vmem_limit_bytes=vmem_limit,
        ),
        cost_estimate=cost,
    )(sel_pair, sel_diff, up_h, l_r, m, s)

    # (B, 3, C, H, W) -> (B, 3C, H, W): free reshape; slab order [l, m, s]
    # matches torch.cat(dim=1).
    return out5.reshape(B, 3 * C, H, W)


def zoom_cat_reference(l, m, s):
    """Pure-JAX reference mirroring the PyTorch forward."""
    B, C, H, W = m.shape
    l4 = l.reshape(B, C, H, 2, W, 2)
    l_out = l4.max(axis=(3, 5)) + l4.mean(axis=(3, 5))
    s_up = jnp.repeat(jnp.repeat(s, 2, axis=2), 2, axis=3)
    return jnp.concatenate([l_out, m, s_up], axis=1)


if __name__ == "__main__":
    key = jax.random.PRNGKey(0)
    kl, km, ks = jax.random.split(key, 3)

    B, C, H, W = 2, 4, 16, 16
    l = jax.random.normal(kl, (B, C, 2 * H, 2 * W), dtype=jnp.float32)
    m = jax.random.normal(km, (B, C, H, W), dtype=jnp.float32)
    s = jax.random.normal(ks, (B, C, H // 2, W // 2), dtype=jnp.float32)

    out = jax.block_until_ready(zoom_cat(l, m, s))
    expected = zoom_cat_reference(l, m, s)

    assert out.shape == (B, 3 * C, H, W), out.shape
    assert out.dtype == m.dtype
    assert jnp.allclose(out, expected, atol=1e-5, rtol=1e-5), "mismatch vs reference"

    print("KERNEL_OK")
</pallas_src>

<mosaic_0001>
module attributes {stable_mosaic.version = 11 : i64} {
  func.func @_zoom_cat_kernel(%arg0: i32, %arg1: i32, %arg2: memref<32x16xf32, #tpu.memory_space<vmem>>, %arg3: memref<32x16xf32, #tpu.memory_space<vmem>>, %arg4: memref<8x16xf32, #tpu.memory_space<vmem>>, %arg5: memref<1x1x16x64xf32, #tpu.memory_space<vmem>>, %arg6: memref<1x1x16x16xf32, #tpu.memory_space<vmem>>, %arg7: memref<1x1x8x8xf32, #tpu.memory_space<vmem>>, %arg8: memref<1x3x1x16x16xf32, #tpu.memory_space<vmem>>) attributes {dimension_semantics = [#tpu.dimension_semantics<parallel>, #tpu.dimension_semantics<parallel>], iteration_bounds = array<i64: 2, 4>, scalar_prefetch = 0 : i64, scratch_operands = 0 : i64, tpu.core_type = #tpu.core_type<tc>, window_params = [{pipeline_mode = #tpu.pipeline_mode<synchronous>, transform_indices = @transform_0, window_bounds = array<i64: 32, 16>}, {pipeline_mode = #tpu.pipeline_mode<synchronous>, transform_indices = @transform_1, window_bounds = array<i64: 32, 16>}, {pipeline_mode = #tpu.pipeline_mode<synchronous>, transform_indices = @transform_2, window_bounds = array<i64: 8, 16>}, {transform_indices = @transform_3, window_bounds = array<i64: 1, 1, 16, 64>}, {transform_indices = @transform_4, window_bounds = array<i64: 1, 1, 16, 16>}, {transform_indices = @transform_5, window_bounds = array<i64: 1, 1, 8, 8>}, {transform_indices = @transform_6, window_bounds = array<i64: 1, 3, 1, 16, 16>}]} {
    %c0 = arith.constant 0 : index
    %c0_0 = arith.constant 0 : index
    %0 = vector.load %arg2[%c0, %c0_0] : memref<32x16xf32, #tpu.memory_space<vmem>>, vector<32x16xf32>
    %c0_1 = arith.constant 0 : index
    %c0_2 = arith.constant 0 : index
    %1 = vector.load %arg3[%c0_1, %c0_2] : memref<32x16xf32, #tpu.memory_space<vmem>>, vector<32x16xf32>
    %c0_3 = arith.constant 0 : index
    %c0_4 = arith.constant 0 : index
    %2 = vector.load %arg4[%c0_3, %c0_4] : memref<8x16xf32, #tpu.memory_space<vmem>>, vector<8x16xf32>
    %c0_5 = arith.constant 0 : index
    %c0_6 = arith.constant 0 : index
    %c0_7 = arith.constant 0 : index
    %c0_8 = arith.constant 0 : index
    %3 = vector.load %arg5[%c0_5, %c0_6, %c0_7, %c0_8] : memref<1x1x16x64xf32, #tpu.memory_space<vmem>>, vector<1x1x16x64xf32>
    %4 = vector.shape_cast %3 : vector<1x1x16x64xf32> to vector<1x16x64xf32>
    %5 = vector.extract_strided_slice %4 {offsets = [0, 0, 0], sizes = [1, 16, 32], strides = [1, 1, 1]} : vector<1x16x64xf32> to vector<1x16x32xf32>
    %6 = vector.extract_strided_slice %4 {offsets = [0, 0, 32], sizes = [1, 16, 32], strides = [1, 1, 1]} : vector<1x16x64xf32> to vector<1x16x32xf32>
    %7 = arith.maximumf %5, %6 : vector<1x16x32xf32>
    %cst = arith.constant 5.000000e-01 : f32
    %8 = vector.broadcast %cst : f32 to vector<1x16x32xf32>
    %9 = arith.mulf %8, %7 : vector<1x16x32xf32>
    %10 = arith.addf %5, %6 : vector<1x16x32xf32>
    %cst_9 = arith.constant 2.500000e-01 : f32
    %11 = vector.broadcast %cst_9 : f32 to vector<1x16x32xf32>
    %12 = arith.mulf %11, %10 : vector<1x16x32xf32>
    %13 = arith.addf %9, %12 : vector<1x16x32xf32>
    %14 = vector.shape_cast %13 : vector<1x16x32xf32> to vector<16x32xf32>
    %15 = vector.shape_cast %7 : vector<1x16x32xf32> to vector<16x32xf32>
    %cst_10 = arith.constant dense<0.000000e+00> : vector<16x16xf32>
    %16 = tpu.matmul %14, %0, %cst_10 {dimension_numbers = #tpu.dot_dimension_numbers<[1], [0], [0], [1], [0, 0, 1, 1], [], []>, precision = #tpu.contract_precision<fp32>} : vector<16x32xf32>, vector<32x16xf32>, vector<16x16xf32> -> vector<16x16xf32>
    %cst_11 = arith.constant dense<0.000000e+00> : vector<16x16xf32>
    %17 = tpu.matmul %15, %1, %cst_11 {dimension_numbers = #tpu.dot_dimension_numbers<[1], [0], [0], [1], [0, 0, 1, 1], [], []>, precision = #tpu.contract_precision<fp32>} : vector<16x32xf32>, vector<32x16xf32>, vector<16x16xf32> -> vector<16x16xf32>
    %18 = math.absf %17 : vector<16x16xf32>
    %cst_12 = arith.constant 5.000000e-01 : f32
    %19 = vector.broadcast %cst_12 : f32 to vector<16x16xf32>
    %20 = arith.mulf %19, %18 : vector<16x16xf32>
    %21 = arith.addf %16, %20 : vector<16x16xf32>
    %22 = vector.shape_cast %21 : vector<16x16xf32> to vector<1x16x16xf32>
    %c0_13 = arith.constant 0 : index
    %c0_14 = arith.constant 0 : index
    %c0_15 = arith.constant 0 : index
    %c0_16 = arith.constant 0 : index
    %c0_17 = arith.constant 0 : index
    %23 = vector.load %arg8[%c0_13, %c0_14, %c0_15, %c0_16, %c0_17] : memref<1x3x1x16x16xf32, #tpu.memory_space<vmem>>, vector<1x1x1x16x16xf32>
    %24 = vector.shape_cast %23 : vector<1x1x1x16x16xf32> to vector<1x16x16xf32>
    %25 = vector.shape_cast %22 : vector<1x16x16xf32> to vector<1x1x1x16x16xf32>
    tpu.vector_store %arg8[%c0_13, %c0_14, %c0_15, %c0_16, %c0_17], %25 {strides = array<i32>} : memref<1x3x1x16x16xf32, #tpu.memory_space<vmem>>, vector<1x1x1x16x16xf32>,
    %c0_18 = arith.constant 0 : index
    %c0_19 = arith.constant 0 : index
    %c0_20 = arith.constant 0 : index
    %c0_21 = arith.constant 0 : index
    %26 = vector.load %arg6[%c0_18, %c0_19, %c0_20, %c0_21] : memref<1x1x16x16xf32, #tpu.memory_space<vmem>>, vector<1x1x16x16xf32>
    %27 = vector.shape_cast %26 : vector<1x1x16x16xf32> to vector<1x16x16xf32>
    %c0_22 = arith.constant 0 : index
    %c1 = arith.constant 1 : index
    %c0_23 = arith.constant 0 : index
    %c0_24 = arith.constant 0 : index
    %c0_25 = arith.constant 0 : index
    %28 = vector.load %arg8[%c0_22, %c1, %c0_23, %c0_24, %c0_25] : memref<1x3x1x16x16xf32, #tpu.memory_space<vmem>>, vector<1x1x1x16x16xf32>
    %29 = vector.shape_cast %28 : vector<1x1x1x16x16xf32> to vector<1x16x16xf32>
    %30 = vector.shape_cast %27 : vector<1x16x16xf32> to vector<1x1x1x16x16xf32>
    tpu.vector_store %arg8[%c0_22, %c1, %c0_23, %c0_24, %c0_25], %30 {strides = array<i32>} : memref<1x3x1x16x16xf32, #tpu.memory_space<vmem>>, vector<1x1x1x16x16xf32>,
    %c0_26 = arith.constant 0 : index
    %c0_27 = arith.constant 0 : index
    %c0_28 = arith.constant 0 : index
    %c0_29 = arith.constant 0 : index
    %31 = vector.load %arg7[%c0_26, %c0_27, %c0_28, %c0_29] : memref<1x1x8x8xf32, #tpu.memory_space<vmem>>, vector<1x1x8x8xf32>
    %32 = vector.shape_cast %31 : vector<1x1x8x8xf32> to vector<1x8x8xf32>
    %33 = vector.shape_cast %32 : vector<1x8x8xf32> to vector<8x8xf32>
    %cst_30 = arith.constant dense<0.000000e+00> : vector<8x16xf32>
    %34 = tpu.matmul %33, %2, %cst_30 {dimension_numbers = #tpu.dot_dimension_numbers<[1], [0], [0], [1], [0, 0, 1, 1], [], []>, precision = #tpu.contract_precision<fp32>} : vector<8x8xf32>, vector<8x16xf32>, vector<8x16xf32> -> vector<8x16xf32>
    %35 = vector.shape_cast %34 : vector<8x16xf32> to vector<8x1x16xf32>
    %36 = vector.shape_cast %35 : vector<8x1x16xf32> to vector<8x1x16xf32>
    %37 = vector.broadcast %36 : vector<8x1x16xf32> to vector<8x2x16xf32>
    %38 = vector.shape_cast %37 : vector<8x2x16xf32> to vector<1x16x16xf32>
    %c0_31 = arith.constant 0 : index
    %c2 = arith.constant 2 : index
    %c0_32 = arith.constant 0 : index
    %c0_33 = arith.constant 0 : index
    %c0_34 = arith.constant 0 : index
    %39 = vector.load %arg8[%c0_31, %c2, %c0_32, %c0_33, %c0_34] : memref<1x3x1x16x16xf32, #tpu.memory_space<vmem>>, vector<1x1x1x16x16xf32>
    %40 = vector.shape_cast %39 : vector<1x1x1x16x16xf32> to vector<1x16x16xf32>
    %41 = vector.shape_cast %38 : vector<1x16x16xf32> to vector<1x1x1x16x16xf32>
    tpu.vector_store %arg8[%c0_31, %c2, %c0_32, %c0_33, %c0_34], %41 {strides = array<i32>} : memref<1x3x1x16x16xf32, #tpu.memory_space<vmem>>, vector<1x1x1x16x16xf32>,
    return
  }
  func.func @transform_0(%arg0: i32, %arg1: i32) -> (i32, i32) {
    %c0_i32 = arith.constant 0 : i32
    %c0_i32_0 = arith.constant 0 : i32
    %c0_i32_1 = arith.constant 0 : i32
    return %c0_i32, %c0_i32_0 : i32, i32
  }
  func.func @transform_1(%arg0: i32, %arg1: i32) -> (i32, i32) {
    %c0_i32 = arith.constant 0 : i32
    %c0_i32_0 = arith.constant 0 : i32
    %c0_i32_1 = arith.constant 0 : i32
    return %c0_i32, %c0_i32_0 : i32, i32
  }
  func.func @transform_2(%arg0: i32, %arg1: i32) -> (i32, i32) {
    %c0_i32 = arith.constant 0 : i32
    %c0_i32_0 = arith.constant 0 : i32
    %c0_i32_1 = arith.constant 0 : i32
    return %c0_i32, %c0_i32_0 : i32, i32
  }
  func.func @transform_3(%arg0: i32, %arg1: i32) -> (i32, i32, i32, i32) {
    %c0_i32 = arith.constant 0 : i32
    %c0_i32_0 = arith.constant 0 : i32
    %c0_i32_1 = arith.constant 0 : i32
    return %arg0, %arg1, %c0_i32, %c0_i32_0 : i32, i32, i32, i32
  }
  func.func @transform_4(%arg0: i32, %arg1: i32) -> (i32, i32, i32, i32) {
    %c0_i32 = arith.constant 0 : i32
    %c0_i32_0 = arith.constant 0 : i32
    %c0_i32_1 = arith.constant 0 : i32
    return %arg0, %arg1, %c0_i32, %c0_i32_0 : i32, i32, i32, i32
  }
  func.func @transform_5(%arg0: i32, %arg1: i32) -> (i32, i32, i32, i32) {
    %c0_i32 = arith.constant 0 : i32
    %c0_i32_0 = arith.constant 0 : i32
    %c0_i32_1 = arith.constant 0 : i32
    return %arg0, %arg1, %c0_i32, %c0_i32_0 : i32, i32, i32, i32
  }
  func.func @transform_6(%arg0: i32, %arg1: i32) -> (i32, i32, i32, i32, i32) {
    %c0_i32 = arith.constant 0 : i32
    %c0_i32_0 = arith.constant 0 : i32
    %c0_i32_1 = arith.constant 0 : i32
    %c0_i32_2 = arith.constant 0 : i32
    return %arg0, %c0_i32, %arg1, %c0_i32_0, %c0_i32_1 : i32, i32, i32, i32, i32
  }
}

</mosaic_0001>

<llo_original>
// kernel: tpu_custom_call.1
$region0: #{tpu_custom_call.1}
  #allocation0 [shape = 'u32[]', space=smem, size = 0x4, offset = 0x4, fixed_abs, tag = 'smem constant byte address 0x4 - core index']
  #allocation1 [shape = 'u32[144,128]{1,0:T(1,128)}', space=vmem, size = 0x12000, scoped, tag = 'internal scratch']
  #allocation8 [shape = 's32[]', space=sflag, size = 0x4, offset = 0, fixed_abs, tag = 'sflag constant byte address 0x0 - dummy sync flag']
  %s0 = inlined_call_operand.vmem [shape: f32[32,16], index: 0, kind: input, shape index: {}]
  %s1 = inlined_call_operand.vmem [shape: f32[32,16], index: 1, kind: input, shape index: {}]
  %s2 = inlined_call_operand.vmem [shape: f32[8,16], index: 2, kind: input, shape index: {}]
  %s3 = inlined_call_operand.hbm [shape: f32[2,4,16,64], index: 3, kind: input, shape index: {}]
  %s4 = inlined_call_operand.hbm [shape: f32[2,4,16,16], index: 4, kind: input, shape index: {}]
  %s5 = inlined_call_operand.vmem [shape: f32[2,4,8,8], index: 5, kind: input, shape index: {}]
  %s6 = inlined_call_operand.hbm [shape: f32[2,3,4,16,16], index: 6, kind: output, shape index: {}]
  %s7 = sld [smem:[#allocation0]]
  $region65: #{tpu_custom_call.1} parent=0
    _
  %s9 = ssub.s32 1, %s7
  %s10 = scalar_select 0, %s9, %s7
  $region1: #{tpu_custom_call.1} parent=0
    #allocation2 [shape = 'u8[16384]{0}', space=vmem, size = 0x4000, scoped, tag = 'input window, operand 3']
    #allocation3 [shape = 's32[2]{0}', space=sflag, size = 0x8, scoped, tag = 'scoped memory for tpu_custom_call.1']
    #allocation4 [shape = 's32[2]{0}', space=sflag, size = 0x8, scoped, tag = 'scoped memory for tpu_custom_call.1']
    #allocation5 [shape = 'u8[16384]{0}', space=vmem, size = 0x4000, scoped, tag = 'input window, operand 4']
    #allocation6 [shape = 's32[2]{0}', space=sflag, size = 0x8, scoped, tag = 'scoped memory for tpu_custom_call.1']
    #allocation7 [shape = 'u8[49152]{0}', space=vmem, size = 0xc000, scoped, tag = 'output window, operand 0']
    %11 = vsyncpa [#allocation3], 0
    %s12 = scalar_lea.sflag [#allocation3], 1
    %13 = vsyncpa %s12, 0
    %14 = vsyncpa [#allocation6], 0
    %s15 = scalar_lea.sflag [#allocation6], 1
    %16 = vsyncpa %s15, 0
    %17 = vsyncpa [#allocation4], 0
    %s18 = scalar_lea.sflag [#allocation4], 1
    %19 = vsyncpa %s18, 0
    loop: start=0, step=1, limit=10
    $region2: #{tpu_custom_call.1} parent=1 // loop_pre_header
      _
    $region3: #{tpu_custom_call.1} parent=1 // loop_header
      %s21 = sphi 0, %s25
      %p22 = scmp.ge.s32.totalorder %s21, 10
      %s28 = sphi 0, %s40
      %s29 = sphi 0, %s36
      %s30 = sphi 0, %s28
      %s31 = sphi 0, %s29
      %s32 = sphi 0, %s30
      %s33 = sphi 0, %s31
      %s41 = sphi 0, %s41
      %s43 = sphi 0, %s41
      %s44 = sphi 0, %s43
      %s58 = sphi 0, %s44
      %s62 = sphi 0, %s62
      %s64 = sphi 0, %s62
      %s65 = sphi 0, %s64
      %s79 = sphi 0, %s65
      %s83 = sphi 0, %s83
      %s85 = sphi 0, %s83
      %s86 = sphi 0, %s85
      %s100 = sphi 0, %s86
      %s108 = sphi 0, %s110
      %s111 = sphi 0, %s108
      %s112 = sphi 0, %s111
      %s128 = sphi 0, %s112
      %s136 = sphi 0, %s138
      %s139 = sphi 0, %s136
      %s140 = sphi 0, %s139
      %s156 = sphi 0, %s140
      %s164 = sphi 0, %s166
      %s167 = sphi 0, %s164
      %s168 = sphi 0, %s167
      %s184 = sphi 0, %s168
      %s192 = sphi 0, %s194
      %s195 = sphi 0, %s192
      %s196 = sphi 0, %s195
      %s212 = sphi 0, %s196
    $region4: #{tpu_custom_call.1} parent=1 // loop_header_branch
      %24 = sbr.rel (%p22) target = $region8
    $region5: #{tpu_custom_call.1} parent=1 // loop_body
      %s26 = ssub.s32 %s21, 1
      %s27 = ssub.s32 %s21, 2
      %s34 = sadd.s32 1, %s29
      %p35 = scmp.ge.s32.totalorder %s34, 4
      %s36 = scalar_select %p35, 0, %s34
      %s37 = sadd.s32 1, %s28
      %s38 = scalar_select %p35, %s37, %s28
      %p39 = scmp.ge.s32.totalorder %s38, 2
      %s40 = scalar_select %p39, 0, %s38
      %s42 = sadd.s32 %s41, 1
      %p45 = scmp.eq.s32.totalorder %s21, 7
      %p46 = scmp.ne.s32.totalorder %s41, %s43
      %p47 = scmp.eq.s32.totalorder %s21, 0
      %p48 = por %p46, %p47
      %p49 = scmp.ne.s32.totalorder %s41, %s43
      %p50 = scmp.eq.s32.totalorder %s26, 7
      %p51 = por %p49, %p50
      %p52 = scmp.ne.s32.totalorder %s43, %s44
      %p53 = scmp.eq.s32.totalorder %s26, 0
      %p54 = por %p52, %p53
      %p55 = scmp.ne.s32.totalorder %s43, %s44
      %p56 = scmp.eq.s32.totalorder %s27, 7
      %p57 = por %p55, %p56
      %p59 = scmp.ne.s32.totalorder %s44, %s58
      %p60 = scmp.eq.s32.totalorder %s27, 0
      %p61 = por %p59, %p60
      %s63 = sadd.s32 %s62, 1
      %p66 = scmp.eq.s32.totalorder %s21, 7
      %p67 = scmp.ne.s32.totalorder %s62, %s64
      %p68 = scmp.eq.s32.totalorder %s21, 0
      %p69 = por %p67, %p68
      %p70 = scmp.ne.s32.totalorder %s62, %s64
      %p71 = scmp.eq.s32.totalorder %s26, 7
      %p72 = por %p70, %p71
      %p73 = scmp.ne.s32.totalorder %s64, %s65
      %p74 = scmp.eq.s32.totalorder %s26, 0
      %p75 = por %p73, %p74
      %p76 = scmp.ne.s32.totalorder %s64, %s65
      %p77 = scmp.eq.s32.totalorder %s27, 7
      %p78 = por %p76, %p77
      %p80 = scmp.ne.s32.totalorder %s65, %s79
      %p81 = scmp.eq.s32.totalorder %s27, 0
      %p82 = por %p80, %p81
      %s84 = sadd.s32 %s83, 1
      %p87 = scmp.eq.s32.totalorder %s21, 7
      %p88 = scmp.ne.s32.totalorder %s83, %s85
      %p89 = scmp.eq.s32.totalorder %s21, 0
      %p90 = por %p88, %p89
      %p91 = scmp.ne.s32.totalorder %s83, %s85
      %p92 = scmp.eq.s32.totalorder %s26, 7
      %p93 = por %p91, %p92
      %p94 = scmp.ne.s32.totalorder %s85, %s86
      %p95 = scmp.eq.s32.totalorder %s26, 0
      %p96 = por %p94, %p95
      %p97 = scmp.ne.s32.totalorder %s85, %s86
      %p98 = scmp.eq.s32.totalorder %s27, 7
      %p99 = por %p97, %p98
      %p101 = scmp.ne.s32.totalorder %s86, %s100
      %p102 = scmp.eq.s32.totalorder %s27, 0
      %p103 = por %p101, %p102
      %s104 = ssub.s32 %s28, %s40
      %s105 = ssub.s32 %s29, %s36
      %s106 = sor.u32 %s104, %s105
      %p107 = scmp.eq.s32.totalorder %s106, 0
      %s109 = sadd.s32 %s108, 1
      %s110 = scalar_select %p107, %s108, %s109
      %p113 = pneg %p107
      %p114 = scmp.eq.s32.totalorder %s21, 7
      %p115 = por %p113, %p114
      %p116 = scmp.ne.s32.totalorder %s108, %s111
      %p117 = scmp.eq.s32.totalorder %s21, 0
      %p118 = por %p116, %p117
      %p119 = scmp.ne.s32.totalorder %s108, %s111
      %p120 = scmp.eq.s32.totalorder %s26, 7
      %p121 = por %p119, %p120
      %p122 = scmp.ne.s32.totalorder %s111, %s112
      %p123 = scmp.eq.s32.totalorder %s26, 0
      %p124 = por %p122, %p123
      %p125 = scmp.ne.s32.totalorder %s111, %s112
      %p126 = scmp.eq.s32.totalorder %s27, 7
      %p127 = por %p125, %p126
      %p129 = scmp.ne.s32.totalorder %s112, %s128
      %p130 = scmp.eq.s32.totalorder %s27, 0
      %p131 = por %p129, %p130
      %s132 = ssub.s32 %s28, %s40
      %s133 = ssub.s32 %s29, %s36
      %s134 = sor.u32 %s132, %s133
      %p135 = scmp.eq.s32.totalorder %s134, 0
      %s137 = sadd.s32 %s136, 1
      %s138 = scalar_select %p135, %s136, %s137
      %p141 = pneg %p135
      %p142 = scmp.eq.s32.totalorder %s21, 7
      %p143 = por %p141, %p142
      %p144 = scmp.ne.s32.totalorder %s136, %s139
      %p145 = scmp.eq.s32.totalorder %s21, 0
      %p146 = por %p144, %p145
      %p147 = scmp.ne.s32.totalorder %s136, %s139
      %p148 = scmp.eq.s32.totalorder %s26, 7
      %p149 = por %p147, %p148
      %p150 = scmp.ne.s32.totalorder %s139, %s140
      %p151 = scmp.eq.s32.totalorder %s26, 0
      %p152 = por %p150, %p151
      %p153 = scmp.ne.s32.totalorder %s139, %s140
      %p154 = scmp.eq.s32.totalorder %s27, 7
      %p155 = por %p153, %p154
      %p157 = scmp.ne.s32.totalorder %s140, %s156
      %p158 = scmp.eq.s32.totalorder %s27, 0
      %p159 = por %p157, %p158
      %s160 = ssub.s32 %s28, %s40
      %s161 = ssub.s32 %s29, %s36
      %s162 = sor.u32 %s160, %s161
      %p163 = scmp.eq.s32.totalorder %s162, 0
      %s165 = sadd.s32 %s164, 1
      %s166 = scalar_select %p163, %s164, %s165
      %p169 = pneg %p163
      %p170 = scmp.eq.s32.totalorder %s21, 7
      %p171 = por %p169, %p170
      %p172 = scmp.ne.s32.totalorder %s164, %s167
      %p173 = scmp.eq.s32.totalorder %s21, 0
      %p174 = por %p172, %p173
      %p175 = scmp.ne.s32.totalorder %s164, %s167
      %p176 = scmp.eq.s32.totalorder %s26, 7
      %p177 = por %p175, %p176
      %p178 = scmp.ne.s32.totalorder %s167, %s168
      %p179 = scmp.eq.s32.totalorder %s26, 0
      %p180 = por %p178, %p179
      %p181 = scmp.ne.s32.totalorder %s167, %s168
      %p182 = scmp.eq.s32.totalorder %s27, 7
      %p183 = por %p181, %p182
      %p185 = scmp.ne.s32.totalorder %s168, %s184
      %p186 = scmp.eq.s32.totalorder %s27, 0
      %p187 = por %p185, %p186
      %s188 = ssub.s32 %s28, %s40
      %s189 = ssub.s32 %s29, %s36
      %s190 = sor.u32 %s188, %s189
      %p191 = scmp.eq.s32.totalorder %s190, 0
      %s193 = sadd.s32 %s192, 1
      %s194 = scalar_select %p191, %s192, %s193
      %p197 = pneg %p191
      %p198 = scmp.eq.s32.totalorder %s21, 7
      %p199 = por %p197, %p198
      %p200 = scmp.ne.s32.totalorder %s192, %s195
      %p201 = scmp.eq.s32.totalorder %s21, 0
      %p202 = por %p200, %p201
      %p203 = scmp.ne.s32.totalorder %s192, %s195
      %p204 = scmp.eq.s32.totalorder %s26, 7
      %p205 = por %p203, %p204
      %p206 = scmp.ne.s32.totalorder %s195, %s196
      %p207 = scmp.eq.s32.totalorder %s26, 0
      %p208 = por %p206, %p207
      %p209 = scmp.ne.s32.totalorder %s195, %s196
      %p210 = scmp.eq.s32.totalorder %s27, 7
      %p211 = por %p209, %p210
      %p213 = scmp.ne.s32.totalorder %s196, %s212
      %p214 = scmp.eq.s32.totalorder %s27, 0
      %p215 = por %p213, %p214
      %p216 = scmp.le.s32.totalorder 1, %s21
      %p217 = scmp.lt.s32.totalorder %s21, 9
      %p218 = pnand %p216, %p217
      %p219 = pneg %p218
      // Predicated region
      $region9: #{tpu_custom_call.1} parent=5 // pred_check
        _
      $region10: #{tpu_custom_call.1} parent=5 // pred_check_branch
        %221 = sbr.rel (%p218) target = $region12
      $region11: #{tpu_custom_call.1} parent=5 // pred_region
        %s222 = ssub.s32 %s21, 1
        // Predicated region
        $region13: #{tpu_custom_call.1} parent=11 // pred_check
          %p223 = pneg %p54
        $region14: #{tpu_custom_call.1} parent=11 // pred_check_branch
          %225 = sbr.rel (%p223) target = $region16
        $region15: #{tpu_custom_call.1} parent=11 // pred_region
          _
        $region16: #{tpu_custom_call.1} parent=11 // pred_fallthru
          _
        // Predicated region
        $region17: #{tpu_custom_call.1} parent=11 // pred_check
          %p226 = pneg %p75
        $region18: #{tpu_custom_call.1} parent=11 // pred_check_branch
          %228 = sbr.rel (%p226) target = $region20
        $region19: #{tpu_custom_call.1} parent=11 // pred_region
          _
        $region20: #{tpu_custom_call.1} parent=11 // pred_fallthru
          _
        // Predicated region
        $region21: #{tpu_custom_call.1} parent=11 // pred_check
          %p229 = pneg %p96
        $region22: #{tpu_custom_call.1} parent=11 // pred_check_branch
          %231 = sbr.rel (%p229) target = $region24
        $region23: #{tpu_custom_call.1} parent=11 // pred_region
          _
        $region24: #{tpu_custom_call.1} parent=11 // pred_fallthru
          _
      $region12: #{tpu_custom_call.1} parent=5 // pred_fallthru
        _
      %p232 = scmp.lt.s32.totalorder %s21, 8
      // Predicated region
      $region25: #{tpu_custom_call.1} parent=5 // pred_check
        %p233 = pneg %p232
      $region26: #{tpu_custom_call.1} parent=5 // pred_check_branch
        %235 = sbr.rel (%p233) target = $region28
      $region27: #{tpu_custom_call.1} parent=5 // pred_region
        // Predicated region
        $region29: #{tpu_custom_call.1} parent=27 // pred_check
          %p236 = pneg %p118
        $region30: #{tpu_custom_call.1} parent=27 // pred_check_branch
          %238 = sbr.rel (%p236) target = $region32
        $region31: #{tpu_custom_call.1} parent=27 // pred_region
          %s239 = sand.u32 %s108, 1
          %s240 = scalar_lea.sflag [#allocation3], %s239
          %s241 = sand.u32 %s108, 1
          %s242 = smul.addr %s241, 16
          %s243 = scalar_lea.vmem [#allocation2], %s242
          %s245 = ssub.s32 256, 256
          %246 = vsyncadd %s240, %s245
          %s247 = smul.addr %s29, 2
          %s248 = smul.addr %s28, 8
          %s249 = sadd.s32 %s247, %s248
          %s250 = smul.addr %s249, 128
          %s251 = scalar_lea.hbm %s3, %s250
          %s252 = sshll.u32 %s243, 4
          %s253 = int_to_ptr.vmem [resolvable:$true] %s252
          %258 = dma.hbm_to_vmem [thread:$0]  %s251, 256, %s253, %s240, 128, 128, 8
        $region32: #{tpu_custom_call.1} parent=27 // pred_fallthru
          _
        // Predicated region
        $region33: #{tpu_custom_call.1} parent=27 // pred_check
          %p259 = pneg %p146
        $region34: #{tpu_custom_call.1} parent=27 // pred_check_branch
          %261 = sbr.rel (%p259) target = $region36
        $region35: #{tpu_custom_call.1} parent=27 // pred_region
          %s262 = sand.u32 %s136, 1
          %s263 = scalar_lea.sflag [#allocation6], %s262
          %s264 = sand.u32 %s136, 1
          %s265 = smul.addr %s264, 16
          %s266 = scalar_lea.vmem [#allocation5], %s265
          %s268 = ssub.s32 256, 256
          %269 = vsyncadd %s263, %s268
          %s270 = smul.addr %s29, 2
          %s271 = smul.addr %s28, 8
          %s272 = sadd.s32 %s270, %s271
          %s273 = smul.addr %s272, 128
          %s274 = scalar_lea.hbm %s4, %s273
          %s275 = sshll.u32 %s266, 4
          %s276 = int_to_ptr.vmem [resolvable:$true] %s275
          %281 = dma.hbm_to_vmem [thread:$0]  %s274, 256, %s276, %s263, 128, 128, 8
        $region36: #{tpu_custom_call.1} parent=27 // pred_fallthru
          _
        // Predicated region
        $region37: #{tpu_custom_call.1} parent=27 // pred_check
          %p282 = pneg %p174
        $region38: #{tpu_custom_call.1} parent=27 // pred_check_branch
          %284 = sbr.rel (%p282) target = $region40
        $region39: #{tpu_custom_call.1} parent=27 // pred_region
          %p285 = scmp.lt.s32.totalorder %s28, 1
          %s286 = scalar_select %p285, %s28, 1
          %p287 = scmp.lt.s32.totalorder %s29, 3
          %s288 = scalar_select %p287, %s29, 3
          %s289 = smul.addr %s286, 4
          %s290 = sadd.s32 %s288, %s289
          %s291 = smul.addr %s290, 8
          %s292 = scalar_lea.vmem %s5, %s291
        $region40: #{tpu_custom_call.1} parent=27 // pred_fallthru
          _
      $region28: #{tpu_custom_call.1} parent=5 // pred_fallthru
        _
      %p293 = scmp.le.s32.totalorder 1, %s21
      %p294 = scmp.lt.s32.totalorder %s21, 9
      %p295 = pnand %p293, %p294
      %p296 = pneg %p295
      // Predicated region
      $region41: #{tpu_custom_call.1} parent=5 // pred_check
        _
      $region42: #{tpu_custom_call.1} parent=5 // pred_check_branch
        %298 = sbr.rel (%p295) target = $region44
      $region43: #{tpu_custom_call.1} parent=5 // pred_region
        %s299 = ssub.s32 %s21, 1
        %s300 = sand.u32 %s111, 1
        %s301 = scalar_lea.sflag [#allocation3], %s300
        %s302 = sand.u32 %s111, 1
        %s303 = smul.addr %s302, 16
        %s304 = scalar_lea.vmem [#allocation2], %s303
        // Predicated region
        $region45: #{tpu_custom_call.1} parent=43 // pred_check
          %p305 = pneg %p124
        $region46: #{tpu_custom_call.1} parent=43 // pred_check_branch
          %307 = sbr.rel (%p305) target = $region48
        $region47: #{tpu_custom_call.1} parent=43 // pred_region
          %308 = dma.done %s301, 256
        $region48: #{tpu_custom_call.1} parent=43 // pred_fallthru
          _
        %s309 = sand.u32 %s139, 1
        %s310 = scalar_lea.sflag [#allocation6], %s309
        %s311 = sand.u32 %s139, 1
        %s312 = smul.addr %s311, 16
        %s313 = scalar_lea.vmem [#allocation5], %s312
        // Predicated region
        $region49: #{tpu_custom_call.1} parent=43 // pred_check
          %p314 = pneg %p152
        $region50: #{tpu_custom_call.1} parent=43 // pred_check_branch
          %316 = sbr.rel (%p314) target = $region52
        $region51: #{tpu_custom_call.1} parent=43 // pred_region
          %317 = dma.done %s310, 256
        $region52: #{tpu_custom_call.1} parent=43 // pred_fallthru
          _
        %p318 = pneg %p54
        %p319 = pneg %p51
        %p320 = pneg %p75
        %p321 = pneg %p72
        %p322 = pneg %p96
        %p323 = pneg %p93
        %s324 = sand.u32 %s111, 1
        %s325 = scalar_lea.sflag [#allocation3], %s324
        %s326 = sand.u32 %s111, 1
        %s327 = smul.addr %s326, 16
        %s328 = scalar_lea.vmem [#allocation2], %s327
        %p329 = pneg %p124
        %p330 = pneg %p121
        %s331 = sand.u32 %s139, 1
        %s332 = scalar_lea.sflag [#allocation6], %s331
        %s333 = sand.u32 %s139, 1
        %s334 = smul.addr %s333, 16
        %s335 = scalar_lea.vmem [#allocation5], %s334
        %p336 = pneg %p152
        %p337 = pneg %p149
        %p338 = scmp.lt.s32.totalorder %s30, 1
        %s339 = scalar_select %p338, %s30, 1
        %p340 = scmp.lt.s32.totalorder %s31, 3
        %s341 = scalar_select %p340, %s31, 3
        %s342 = smul.addr %s339, 4
        %s343 = sadd.s32 %s341, %s342
        %s344 = smul.addr %s343, 8
        %s345 = scalar_lea.vmem %s5, %s344
        %p346 = pneg %p180
        %p347 = pneg %p177
        %p348 = pneg %p208
        %p349 = pneg %p205
        %s350 = sand.u32 %s195, 1
        %s351 = scalar_lea.sflag [#allocation4], %s350
        %s352 = sand.u32 %s195, 1
        %s353 = smul.addr %s352, 48
        %s354 = scalar_lea.vmem [#allocation7], %s353
        %p355 = scmp.lt.s32.totalorder %s30, 1
        %s356 = scalar_select %p355, %s30, 1
        %p357 = scmp.lt.s32.totalorder %s31, 3
        %s358 = scalar_select %p357, %s31, 3
        %s359 = smul.addr %s356, 4
        %s360 = sadd.s32 %s358, %s359
        %s361 = smul.addr %s360, 8
        %s362 = scalar_lea.vmem %s5, %s361
        %v363 = vld [vmem:[%s0] sm:$0xff]
        %v364 = vld [vmem:[%s0 + $0x8] sm:$0xff]
        %v365 = vld [vmem:[%s0 + $0x10] sm:$0xff]
        %v366 = vld [vmem:[%s0 + $0x18] sm:$0xff]
        %v367 = vld [vmem:[%s1] sm:$0xff]
        %v368 = vld [vmem:[%s1 + $0x8] sm:$0xff]
        %v369 = vld [vmem:[%s1 + $0x10] sm:$0xff]
        %v370 = vld [vmem:[%s1 + $0x18] sm:$0xff]
        %v371 = vld [vmem:[%s2] sm:$0xff]
        %v372 = vld [vmem:[%s304] sm:$0xff]
        %v373 = vld [vmem:[%s304 + $0x8] sm:$0xff]
        %376 = vrot.lane.b32.xlu0 %v372, 96
        %v377 = vpop.permute.xlu0 %376
        %378 = vrot.lane.b32.xlu0 %v373, 96
        %v379 = vpop.permute.xlu0 %378
        %v382 = vmax.f32 %v372, %v377
        %v383 = vmax.f32 %v373, %v379
        %v384 = vmul.f32 %v382, 0.5
        %v385 = vmul.f32 %v383, 0.5
        %v386 = vadd.f32 %v372, %v377
        %v387 = vadd.f32 %v373, %v379
        %v388 = vmul.f32 %v386, 0.25
        %v389 = vmul.f32 %v387, 0.25
        %v390 = vadd.f32 %v384, %v388
        %v391 = vadd.f32 %v385, %v389
        %vm392 = vcmask 261120
        %v394 = vsel %vm392, %v382, 0
        %v397 = vsel %vm392, %v383, 0
        %399 = vmatprep.subr.mxu0 0.0
        %v400 = vand.u32 %v367, 4294901760
        %401 = vmatpush1.msra.mxu0 %v400
        %402 = vmatprep.subr.mxu0 0.0
        %v403 = vand.u32 %v368, 4294901760
        %404 = vmatpush1.msra.mxu0 %v403
        %405 = vmatprep.subr.mxu0 0.0
        %v406 = vand.u32 %v369, 4294901760
        %407 = vmatpush1.msra.mxu0 %v406
        %408 = vmatprep.subr.mxu0 0.0
        %v409 = vand.u32 %v370, 4294901760
        %410 = vmatpush1.msra.mxu0 %v409
        %411 = vmatprep.subr.mxu0 0.0
        %412 = vmatpush1.msra.mxu0 0.0
        %413 = vmatprep.subr.mxu0 0.0
        %414 = vmatpush1.msra.mxu0 0.0
        %415 = vmatprep.subr.mxu0 0.0
        %416 = vmatpush1.msra.mxu0 0.0
        %417 = vmatprep.subr.mxu0 0.0
        %418 = vmatpush1.msra.mxu0 0.0
        %419 = vmatprep.subr.mxu0 0.0
        %420 = vmatpush1.msra.mxu0 0.0
        %421 = vmatprep.subr.mxu0 0.0
        %422 = vmatpush1.msra.mxu0 0.0
        %423 = vmatprep.subr.mxu0 0.0
        %424 = vmatpush1.msra.mxu0 0.0
        %425 = vmatprep.subr.mxu0 0.0
        %426 = vmatpush1.msra.mxu0 0.0
        %427 = vmatprep.subr.mxu0 0.0
        %428 = vmatpush1.msra.mxu0 0.0
        %429 = vmatprep.subr.mxu0 0.0
        %430 = vmatpush1.msra.mxu0 0.0
        %431 = vmatprep.subr.mxu0 0.0
        %432 = vmatpush1.msra.mxu0 0.0
        %433 = vmatprep.subr.mxu0 0.0
        %434 = vmatpush1.msra.mxu0 0.0
        %435 = vmatprep.subr.mxu0 0.0
        %436 = vmatpush1.msra.mxu0 0.0
        %437 = vmatprep.subr.mxu0 0.0
        %438 = vmatpush1.msra.mxu0 0.0
        %439 = vmatprep.subr.mxu0 0.0
        %440 = vmatpush1.msra.mxu0 0.0
        %441 = vmatprep.subr.mxu0 0.0
        %442 = vmatpush1.msra.mxu0 0.0
        %443 = vmatprep.subr.mxu0 0.0
        %444 = vmatpush1.msra.mxu0 0.0
        %445 = vmatprep.subr.mxu0 0.0
        %446 = vmatpush1.msra.mxu0 0.0
        %447 = vmatprep.subr.mxu0 0.0
        %448 = vmatpush1.msra.mxu0 0.0
        %449 = vmatprep.subr.mxu0 0.0
        %450 = vmatpush1.msra.mxu0 0.0
        %451 = vmatprep.subr.mxu0 0.0
        %452 = vmatpush1.msra.mxu0 0.0
        %453 = vmatprep.subr.mxu0 0.0
        %454 = vmatpush1.msra.mxu0 0.0
        %455 = vmatprep.subr.mxu0 0.0
        %456 = vmatpush1.msra.mxu0 0.0
        %457 = vmatprep.subr.mxu0 0.0
        %458 = vmatpush1.msra.mxu0 0.0
        %459 = vmatprep.subr.mxu0 0.0
        %460 = vmatpush1.msra.mxu0 0.0
        %461 = vmatprep.subr.mxu0 0.0
        %462 = vmatpush1.msra.mxu0 0.0
        %463 = vmatprep.subr.mxu0 0.0
        %464 = vmatpush1.msra.mxu0 0.0
        %465 = vmatprep.subr.mxu0 0.0
        %466 = vmatpush1.msra.mxu0 0.0
        %467 = vmatprep.mubr.f32.mxu0 0.0
        %v468 = vand.u32 %v394, 4294901760
        %v469 = vsub.f32 %v394, %v468
        %v470 = vand.u32 %v469, 4294901760
        %v471 = vsub.f32 %v469, %v470
        %v472 = vand.u32 %v471, 4294901760
        %473 = vmatmul.mubr.f32.gmra.mrb[0].mxu0 %v472
        %v474 = vpop.f32.mrb[0].mxu0
        %v475 = vadd.f32 0.0, %v474
        %v476 = vpop.f32.mrb[0].mxu0
        %477 = vmatprep.mubr.f32.mxu0 0.0
        %v478 = vand.u32 %v397, 4294901760
        %v479 = vsub.f32 %v397, %v478
        %v480 = vand.u32 %v479, 4294901760
        %v481 = vsub.f32 %v479, %v480
        %v482 = vand.u32 %v481, 4294901760
        %483 = vmatmul.mubr.f32.gmra.mrb[0].mxu0 %v482
        %v484 = vpop.f32.mrb[0].mxu0
        %v485 = vadd.f32 0.0, %v484
        %v486 = vpop.f32.mrb[0].mxu0
        %487 = vdwg.mxu0
        %488 = vmatprep.subr.mxu0 0.0
        %v489 = vand.u32 %v367, 4294901760
        %v490 = vsub.f32 %v367, %v489
        %v491 = vand.u32 %v490, 4294901760
        %v492 = vsub.f32 %v490, %v491
        %v493 = vand.u32 %v492, 4294901760
        %494 = vmatpush1.msra.mxu0 %v493
        %495 = vmatprep.subr.mxu0 0.0
        %v496 = vand.u32 %v368, 4294901760
        %v497 = vsub.f32 %v368, %v496
        %v498 = vand.u32 %v497, 4294901760
        %v499 = vsub.f32 %v497, %v498
        %v500 = vand.u32 %v499, 4294901760
        %501 = vmatpush1.msra.mxu0 %v500
        %502 = vmatprep.subr.mxu0 0.0
        %v503 = vand.u32 %v369, 4294901760
        %v504 = vsub.f32 %v369, %v503
        %v505 = vand.u32 %v504, 4294901760
        %v506 = vsub.f32 %v504, %v505
        %v507 = vand.u32 %v506, 4294901760
        %508 = vmatpush1.msra.mxu0 %v507
        %509 = vmatprep.subr.mxu0 0.0
        %v510 = vand.u32 %v370, 4294901760
        %v511 = vsub.f32 %v370, %v510
        %v512 = vand.u32 %v511, 4294901760
        %v513 = vsub.f32 %v511, %v512
        %v514 = vand.u32 %v513, 4294901760
        %515 = vmatpush1.msra.mxu0 %v514
        %516 = vmatprep.subr.mxu0 0.0
        %517 = vmatpush1.msra.mxu0 0.0
        %518 = vmatprep.subr.mxu0 0.0
        %519 = vmatpush1.msra.mxu0 0.0
        %520 = vmatprep.subr.mxu0 0.0
        %521 = vmatpush1.msra.mxu0 0.0
        %522 = vmatprep.subr.mxu0 0.0
        %523 = vmatpush1.msra.mxu0 0.0
        %524 = vmatprep.subr.mxu0 0.0
        %525 = vmatpush1.msra.mxu0 0.0
        %526 = vmatprep.subr.mxu0 0.0
        %527 = vmatpush1.msra.mxu0 0.0
        %528 = vmatprep.subr.mxu0 0.0
        %529 = vmatpush1.msra.mxu0 0.0
        %530 = vmatprep.subr.mxu0 0.0
        %531 = vmatpush1.msra.mxu0 0.0
        %532 = vmatprep.subr.mxu0 0.0
        %533 = vmatpush1.msra.mxu0 0.0
        %534 = vmatprep.subr.mxu0 0.0
        %535 = vmatpush1.msra.mxu0 0.0
        %536 = vmatprep.subr.mxu0 0.0
        %537 = vmatpush1.msra.mxu0 0.0
        %538 = vmatprep.subr.mxu0 0.0
        %539 = vmatpush1.msra.mxu0 0.0
        %540 = vmatprep.subr.mxu0 0.0
        %541 = vmatpush1.msra.mxu0 0.0
        %542 = vmatprep.subr.mxu0 0.0
        %543 = vmatpush1.msra.mxu0 0.0
        %544 = vmatprep.subr.mxu0 0.0
        %545 = vmatpush1.msra.mxu0 0.0
        %546 = vmatprep.subr.mxu0 0.0
        %547 = vmatpush1.msra.mxu0 0.0
        %548 = vmatprep.subr.mxu0 0.0
        %549 = vmatpush1.msra.mxu0 0.0
        %550 = vmatprep.subr.mxu0 0.0
        %551 = vmatpush1.msra.mxu0 0.0
        %552 = vmatprep.subr.mxu0 0.0
        %553 = vmatpush1.msra.mxu0 0.0
        %554 = vmatprep.subr.mxu0 0.0
        %555 = vmatpush1.msra.mxu0 0.0
        %556 = vmatprep.subr.mxu0 0.0
        %557 = vmatpush1.msra.mxu0 0.0
        %558 = vmatprep.subr.mxu0 0.0
        %559 = vmatpush1.msra.mxu0 0.0
        %560 = vmatprep.subr.mxu0 0.0
        %561 = vmatpush1.msra.mxu0 0.0
        %562 = vmatprep.subr.mxu0 0.0
        %563 = vmatpush1.msra.mxu0 0.0
        %564 = vmatprep.subr.mxu0 0.0
        %565 = vmatpush1.msra.mxu0 0.0
        %566 = vmatprep.subr.mxu0 0.0
        %567 = vmatpush1.msra.mxu0 0.0
        %568 = vmatprep.subr.mxu0 0.0
        %569 = vmatpush1.msra.mxu0 0.0
        %570 = vmatprep.subr.mxu0 0.0
        %571 = vmatpush1.msra.mxu0 0.0
        %572 = vmatprep.mubr.f32.mxu0 0.0
        %v573 = vand.u32 %v394, 4294901760
        %574 = vmatmul.mubr.f32.gmra.mrb[0].mxu0 %v573
        %v575 = vpop.f32.mrb[0].mxu0
        %v576 = vadd.f32 %v475, %v575
        %v577 = vpop.f32.mrb[0].mxu0
        %578 = vmatprep.mubr.f32.mxu0 0.0
        %v579 = vand.u32 %v397, 4294901760
        %580 = vmatmul.mubr.f32.gmra.mrb[0].mxu0 %v579
        %v581 = vpop.f32.mrb[0].mxu0
        %v582 = vadd.f32 %v485, %v581
        %v583 = vpop.f32.mrb[0].mxu0
        %584 = vdwg.mxu0
        %585 = vmatprep.subr.mxu0 0.0
        %v586 = vand.u32 %v367, 4294901760
        %v587 = vsub.f32 %v367, %v586
        %588 = vmatpush1.msra.mxu0 %v587
        %589 = vmatprep.subr.mxu0 0.0
        %v590 = vand.u32 %v368, 4294901760
        %v591 = vsub.f32 %v368, %v590
        %592 = vmatpush1.msra.mxu0 %v591
        %593 = vmatprep.subr.mxu0 0.0
        %v594 = vand.u32 %v369, 4294901760
        %v595 = vsub.f32 %v369, %v594
        %596 = vmatpush1.msra.mxu0 %v595
        %597 = vmatprep.subr.mxu0 0.0
        %v598 = vand.u32 %v370, 4294901760
        %v599 = vsub.f32 %v370, %v598
        %600 = vmatpush1.msra.mxu0 %v599
        %601 = vmatprep.subr.mxu0 0.0
        %602 = vmatpush1.msra.mxu0 0.0
        %603 = vmatprep.subr.mxu0 0.0
        %604 = vmatpush1.msra.mxu0 0.0
        %605 = vmatprep.subr.mxu0 0.0
        %606 = vmatpush1.msra.mxu0 0.0
        %607 = vmatprep.subr.mxu0 0.0
        %608 = vmatpush1.msra.mxu0 0.0
        %609 = vmatprep.subr.mxu0 0.0
        %610 = vmatpush1.msra.mxu0 0.0
        %611 = vmatprep.subr.mxu0 0.0
        %612 = vmatpush1.msra.mxu0 0.0
        %613 = vmatprep.subr.mxu0 0.0
        %614 = vmatpush1.msra.mxu0 0.0
        %615 = vmatprep.subr.mxu0 0.0
        %616 = vmatpush1.msra.mxu0 0.0
        %617 = vmatprep.subr.mxu0 0.0
        %618 = vmatpush1.msra.mxu0 0.0
        %619 = vmatprep.subr.mxu0 0.0
        %620 = vmatpush1.msra.mxu0 0.0
        %621 = vmatprep.subr.mxu0 0.0
        %622 = vmatpush1.msra.mxu0 0.0
        %623 = vmatprep.subr.mxu0 0.0
        %624 = vmatpush1.msra.mxu0 0.0
        %625 = vmatprep.subr.mxu0 0.0
        %626 = vmatpush1.msra.mxu0 0.0
        %627 = vmatprep.subr.mxu0 0.0
        %628 = vmatpush1.msra.mxu0 0.0
        %629 = vmatprep.subr.mxu0 0.0
        %630 = vmatpush1.msra.mxu0 0.0
        %631 = vmatprep.subr.mxu0 0.0
        %632 = vmatpush1.msra.mxu0 0.0
        %633 = vmatprep.subr.mxu0 0.0
        %634 = vmatpush1.msra.mxu0 0.0
        %635 = vmatprep.subr.mxu0 0.0
        %636 = vmatpush1.msra.mxu0 0.0
        %637 = vmatprep.subr.mxu0 0.0
        %638 = vmatpush1.msra.mxu0 0.0
        %639 = vmatprep.subr.mxu0 0.0
        %640 = vmatpush1.msra.mxu0 0.0
        %641 = vmatprep.subr.mxu0 0.0
        %642 = vmatpush1.msra.mxu0 0.0
        %643 = vmatprep.subr.mxu0 0.0
        %644 = vmatpush1.msra.mxu0 0.0
        %645 = vmatprep.subr.mxu0 0.0
        %646 = vmatpush1.msra.mxu0 0.0
        %647 = vmatprep.subr.mxu0 0.0
        %648 = vmatpush1.msra.mxu0 0.0
        %649 = vmatprep.subr.mxu0 0.0
        %650 = vmatpush1.msra.mxu0 0.0
        %651 = vmatprep.subr.mxu0 0.0
        %652 = vmatpush1.msra.mxu0 0.0
        %653 = vmatprep.subr.mxu0 0.0
        %654 = vmatpush1.msra.mxu0 0.0
        %655 = vmatprep.subr.mxu0 0.0
        %656 = vmatpush1.msra.mxu0 0.0
        %657 = vmatprep.mubr.f32.mxu0 0.0
        %v658 = vand.u32 %v394, 4294901760
        %v659 = vsub.f32 %v394, %v658
        %660 = vmatmul.mubr.f32.gmra.mrb[0].mxu0 %v659
        %v661 = vpop.f32.mrb[0].mxu0
        %v662 = vadd.f32 %v576, %v661
        %v663 = vpop.f32.mrb[0].mxu0
        %664 = vmatprep.mubr.f32.mxu0 0.0
        %v665 = vand.u32 %v397, 4294901760
        %v666 = vsub.f32 %v397, %v665
        %667 = vmatmul.mubr.f32.gmra.mrb[0].mxu0 %v666
        %v668 = vpop.f32.mrb[0].mxu0
        %v669 = vadd.f32 %v582, %v668
        %v670 = vpop.f32.mrb[0].mxu0
        %671 = vdwg.mxu0
        %672 = vmatprep.subr.mxu0 0.0
        %v673 = vand.u32 %v367, 4294901760
        %674 = vmatpush1.msra.mxu0 %v673
        %675 = vmatprep.subr.mxu0 0.0
        %v676 = vand.u32 %v368, 4294901760
        %677 = vmatpush1.msra.mxu0 %v676
        %678 = vmatprep.subr.mxu0 0.0
        %v679 = vand.u32 %v369, 4294901760
        %680 = vmatpush1.msra.mxu0 %v679
        %681 = vmatprep.subr.mxu0 0.0
        %v682 = vand.u32 %v370, 4294901760
        %683 = vmatpush1.msra.mxu0 %v682
        %684 = vmatprep.subr.mxu0 0.0
        %685 = vmatpush1.msra.mxu0 0.0
        %686 = vmatprep.subr.mxu0 0.0
        %687 = vmatpush1.msra.mxu0 0.0
        %688 = vmatprep.subr.mxu0 0.0
        %689 = vmatpush1.msra.mxu0 0.0
        %690 = vmatprep.subr.mxu0 0.0
        %691 = vmatpush1.msra.mxu0 0.0
        %692 = vmatprep.subr.mxu0 0.0
        %693 = vmatpush1.msra.mxu0 0.0
        %694 = vmatprep.subr.mxu0 0.0
        %695 = vmatpush1.msra.mxu0 0.0
        %696 = vmatprep.subr.mxu0 0.0
        %697 = vmatpush1.msra.mxu0 0.0
        %698 = vmatprep.subr.mxu0 0.0
        %699 = vmatpush1.msra.mxu0 0.0
        %700 = vmatprep.subr.mxu0 0.0
        %701 = vmatpush1.msra.mxu0 0.0
        %702 = vmatprep.subr.mxu0 0.0
        %703 = vmatpush1.msra.mxu0 0.0
        %704 = vmatprep.subr.mxu0 0.0
        %705 = vmatpush1.msra.mxu0 0.0
        %706 = vmatprep.subr.mxu0 0.0
        %707 = vmatpush1.msra.mxu0 0.0
        %708 = vmatprep.subr.mxu0 0.0
        %709 = vmatpush1.msra.mxu0 0.0
        %710 = vmatprep.subr.mxu0 0.0
        %711 = vmatpush1.msra.mxu0 0.0
        %712 = vmatprep.subr.mxu0 0.0
        %713 = vmatpush1.msra.mxu0 0.0
        %714 = vmatprep.subr.mxu0 0.0
        %715 = vmatpush1.msra.mxu0 0.0
        %716 = vmatprep.subr.mxu0 0.0
        %717 = vmatpush1.msra.mxu0 0.0
        %718 = vmatprep.subr.mxu0 0.0
        %719 = vmatpush1.msra.mxu0 0.0
        %720 = vmatprep.subr.mxu0 0.0
        %721 = vmatpush1.msra.mxu0 0.0
        %722 = vmatprep.subr.mxu0 0.0
        %723 = vmatpush1.msra.mxu0 0.0
        %724 = vmatprep.subr.mxu0 0.0
        %725 = vmatpush1.msra.mxu0 0.0
        %726 = vmatprep.subr.mxu0 0.0
        %727 = vmatpush1.msra.mxu0 0.0
        %728 = vmatprep.subr.mxu0 0.0
        %729 = vmatpush1.msra.mxu0 0.0
        %730 = vmatprep.subr.mxu0 0.0
        %731 = vmatpush1.msra.mxu0 0.0
        %732 = vmatprep.subr.mxu0 0.0
        %733 = vmatpush1.msra.mxu0 0.0
        %734 = vmatprep.subr.mxu0 0.0
        %735 = vmatpush1.msra.mxu0 0.0
        %736 = vmatprep.subr.mxu0 0.0
        %737 = vmatpush1.msra.mxu0 0.0
        %738 = vmatprep.subr.mxu0 0.0
        %739 = vmatpush1.msra.mxu0 0.0
        %740 = vmatprep.mubr.f32.mxu0 0.0
        %v741 = vand.u32 %v394, 4294901760
        %v742 = vsub.f32 %v394, %v741
        %v743 = vand.u32 %v742, 4294901760
        %744 = vmatmul.mubr.f32.gmra.mrb[0].mxu0 %v743
        %v745 = vpop.f32.mrb[0].mxu0
        %v746 = vadd.f32 %v662, %v745
        %v747 = vpop.f32.mrb[0].mxu0
        %748 = vmatprep.mubr.f32.mxu0 0.0
        %v749 = vand.u32 %v397, 4294901760
        %v750 = vsub.f32 %v397, %v749
        %v751 = vand.u32 %v750, 4294901760
        %752 = vmatmul.mubr.f32.gmra.mrb[0].mxu0 %v751
        %v753 = vpop.f32.mrb[0].mxu0
        %v754 = vadd.f32 %v669, %v753
        %v755 = vpop.f32.mrb[0].mxu0
        %756 = vdwg.mxu0
        %757 = vmatprep.subr.mxu0 0.0
        %v758 = vand.u32 %v367, 4294901760
        %v759 = vsub.f32 %v367, %v758
        %v760 = vand.u32 %v759, 4294901760
        %761 = vmatpush1.msra.mxu0 %v760
        %762 = vmatprep.subr.mxu0 0.0
        %v763 = vand.u32 %v368, 4294901760
        %v764 = vsub.f32 %v368, %v763
        %v765 = vand.u32 %v764, 4294901760
        %766 = vmatpush1.msra.mxu0 %v765
        %767 = vmatprep.subr.mxu0 0.0
        %v768 = vand.u32 %v369, 4294901760
        %v769 = vsub.f32 %v369, %v768
        %v770 = vand.u32 %v769, 4294901760
        %771 = vmatpush1.msra.mxu0 %v770
        %772 = vmatprep.subr.mxu0 0.0
        %v773 = vand.u32 %v370, 4294901760
        %v774 = vsub.f32 %v370, %v773
        %v775 = vand.u32 %v774, 4294901760
        %776 = vmatpush1.msra.mxu0 %v775
        %777 = vmatprep.subr.mxu0 0.0
        %778 = vmatpush1.msra.mxu0 0.0
        %779 = vmatprep.subr.mxu0 0.0
        %780 = vmatpush1.msra.mxu0 0.0
        %781 = vmatprep.subr.mxu0 0.0
        %782 = vmatpush1.msra.mxu0 0.0
        %783 = vmatprep.subr.mxu0 0.0
        %784 = vmatpush1.msra.mxu0 0.0
        %785 = vmatprep.subr.mxu0 0.0
        %786 = vmatpush1.msra.mxu0 0.0
        %787 = vmatprep.subr.mxu0 0.0
        %788 = vmatpush1.msra.mxu0 0.0
        %789 = vmatprep.subr.mxu0 0.0
        %790 = vmatpush1.msra.mxu0 0.0
        %791 = vmatprep.subr.mxu0 0.0
        %792 = vmatpush1.msra.mxu0 0.0
        %793 = vmatprep.subr.mxu0 0.0
        %794 = vmatpush1.msra.mxu0 0.0
        %795 = vmatprep.subr.mxu0 0.0
        %796 = vmatpush1.msra.mxu0 0.0
        %797 = vmatprep.subr.mxu0 0.0
        %798 = vmatpush1.msra.mxu0 0.0
        %799 = vmatprep.subr.mxu0 0.0
        %800 = vmatpush1.msra.mxu0 0.0
        %801 = vmatprep.subr.mxu0 0.0
        %802 = vmatpush1.msra.mxu0 0.0
        %803 = vmatprep.subr.mxu0 0.0
        %804 = vmatpush1.msra.mxu0 0.0
        %805 = vmatprep.subr.mxu0 0.0
        %806 = vmatpush1.msra.mxu0 0.0
        %807 = vmatprep.subr.mxu0 0.0
        %808 = vmatpush1.msra.mxu0 0.0
        %809 = vmatprep.subr.mxu0 0.0
        %810 = vmatpush1.msra.mxu0 0.0
        %811 = vmatprep.subr.mxu0 0.0
        %812 = vmatpush1.msra.mxu0 0.0
        %813 = vmatprep.subr.mxu0 0.0
        %814 = vmatpush1.msra.mxu0 0.0
        %815 = vmatprep.subr.mxu0 0.0
        %816 = vmatpush1.msra.mxu0 0.0
        %817 = vmatprep.subr.mxu0 0.0
        %818 = vmatpush1.msra.mxu0 0.0
        %819 = vmatprep.subr.mxu0 0.0
        %820 = vmatpush1.msra.mxu0 0.0
        %821 = vmatprep.subr.mxu0 0.0
        %822 = vmatpush1.msra.mxu0 0.0
        %823 = vmatprep.subr.mxu0 0.0
        %824 = vmatpush1.msra.mxu0 0.0
        %825 = vmatprep.subr.mxu0 0.0
        %826 = vmatpush1.msra.mxu0 0.0
        %827 = vmatprep.subr.mxu0 0.0
        %828 = vmatpush1.msra.mxu0 0.0
        %829 = vmatprep.subr.mxu0 0.0
        %830 = vmatpush1.msra.mxu0 0.0
        %831 = vmatprep.subr.mxu0 0.0
        %832 = vmatpush1.msra.mxu0 0.0
        %833 = vmatprep.mubr.f32.mxu0 0.0
        %v834 = vand.u32 %v394, 4294901760
        %835 = vmatmul.mubr.f32.gmra.mrb[0].mxu0 %v834
        %v836 = vpop.f32.mrb[0].mxu0
        %v837 = vadd.f32 %v746, %v836
        %v838 = vpop.f32.mrb[0].mxu0
        %839 = vmatprep.mubr.f32.mxu0 0.0
        %v840 = vand.u32 %v397, 4294901760
        %841 = vmatmul.mubr.f32.gmra.mrb[0].mxu0 %v840
        %v842 = vpop.f32.mrb[0].mxu0
        %v843 = vadd.f32 %v754, %v842
        %v844 = vpop.f32.mrb[0].mxu0
        %845 = vdwg.mxu0
        %846 = vmatprep.subr.mxu0 0.0
        %v847 = vand.u32 %v367, 4294901760
        %848 = vmatpush1.msra.mxu0 %v847
        %849 = vmatprep.subr.mxu0 0.0
        %v850 = vand.u32 %v368, 4294901760
        %851 = vmatpush1.msra.mxu0 %v850
        %852 = vmatprep.subr.mxu0 0.0
        %v853 = vand.u32 %v369, 4294901760
        %854 = vmatpush1.msra.mxu0 %v853
        %855 = vmatprep.subr.mxu0 0.0
        %v856 = vand.u32 %v370, 4294901760
        %857 = vmatpush1.msra.mxu0 %v856
        %858 = vmatprep.subr.mxu0 0.0
        %859 = vmatpush1.msra.mxu0 0.0
        %860 = vmatprep.subr.mxu0 0.0
        %861 = vmatpush1.msra.mxu0 0.0
        %862 = vmatprep.subr.mxu0 0.0
        %863 = vmatpush1.msra.mxu0 0.0
        %864 = vmatprep.subr.mxu0 0.0
        %865 = vmatpush1.msra.mxu0 0.0
        %866 = vmatprep.subr.mxu0 0.0
        %867 = vmatpush1.msra.mxu0 0.0
        %868 = vmatprep.subr.mxu0 0.0
        %869 = vmatpush1.msra.mxu0 0.0
        %870 = vmatprep.subr.mxu0 0.0
        %871 = vmatpush1.msra.mxu0 0.0
        %872 = vmatprep.subr.mxu0 0.0
        %873 = vmatpush1.msra.mxu0 0.0
        %874 = vmatprep.subr.mxu0 0.0
        %875 = vmatpush1.msra.mxu0 0.0
        %876 = vmatprep.subr.mxu0 0.0
        %877 = vmatpush1.msra.mxu0 0.0
        %878 = vmatprep.subr.mxu0 0.0
        %879 = vmatpush1.msra.mxu0 0.0
        %880 = vmatprep.subr.mxu0 0.0
        %881 = vmatpush1.msra.mxu0 0.0
        %882 = vmatprep.subr.mxu0 0.0
        %883 = vmatpush1.msra.mxu0 0.0
        %884 = vmatprep.subr.mxu0 0.0
        %885 = vmatpush1.msra.mxu0 0.0
        %886 = vmatprep.subr.mxu0 0.0
        %887 = vmatpush1.msra.mxu0 0.0
        %888 = vmatprep.subr.mxu0 0.0
        %889 = vmatpush1.msra.mxu0 0.0
        %890 = vmatprep.subr.mxu0 0.0
        %891 = vmatpush1.msra.mxu0 0.0
        %892 = vmatprep.subr.mxu0 0.0
        %893 = vmatpush1.msra.mxu0 0.0
        %894 = vmatprep.subr.mxu0 0.0
        %895 = vmatpush1.msra.mxu0 0.0
        %896 = vmatprep.subr.mxu0 0.0
        %897 = vmatpush1.msra.mxu0 0.0
        %898 = vmatprep.subr.mxu0 0.0
        %899 = vmatpush1.msra.mxu0 0.0
        %900 = vmatprep.subr.mxu0 0.0
        %901 = vmatpush1.msra.mxu0 0.0
        %902 = vmatprep.subr.mxu0 0.0
        %903 = vmatpush1.msra.mxu0 0.0
        %904 = vmatprep.subr.mxu0 0.0
        %905 = vmatpush1.msra.mxu0 0.0
        %906 = vmatprep.subr.mxu0 0.0
        %907 = vmatpush1.msra.mxu0 0.0
        %908 = vmatprep.subr.mxu0 0.0
        %909 = vmatpush1.msra.mxu0 0.0
        %910 = vmatprep.subr.mxu0 0.0
        %911 = vmatpush1.msra.mxu0 0.0
        %912 = vmatprep.subr.mxu0 0.0
        %913 = vmatpush1.msra.mxu0 0.0
        %914 = vmatprep.mubr.f32.mxu0 0.0
        %v915 = vand.u32 %v394, 4294901760
        %916 = vmatmul.mubr.f32.gmra.mrb[0].mxu0 %v915
        %v917 = vpop.f32.mrb[0].mxu0
        %v918 = vadd.f32 %v837, %v917
        %v919 = vpop.f32.mrb[0].mxu0
        %920 = vmatprep.mubr.f32.mxu0 0.0
        %v921 = vand.u32 %v397, 4294901760
        %922 = vmatmul.mubr.f32.gmra.mrb[0].mxu0 %v921
        %v923 = vpop.f32.mrb[0].mxu0
        %v924 = vadd.f32 %v843, %v923
        %v925 = vpop.f32.mrb[0].mxu0
        %926 = vdwg.mxu0
        %v927 = vand.u32 2147483647, %v918
        %v928 = vand.u32 2147483647, %v924
        %v929 = vmul.f32 %v927, 0.5
        %v930 = vmul.f32 %v928, 0.5
        %v932 = vsel %vm392, %v390, 0
        %v935 = vsel %vm392, %v391, 0
        %937 = vmatprep.subr.mxu0 0.0
        %v938 = vand.u32 %v363, 4294901760
        %939 = vmatpush1.msra.mxu0 %v938
        %940 = vmatprep.subr.mxu0 0.0
        %v941 = vand.u32 %v364, 4294901760
        %942 = vmatpush1.msra.mxu0 %v941
        %943 = vmatprep.subr.mxu0 0.0
        %v944 = vand.u32 %v365, 4294901760
        %945 = vmatpush1.msra.mxu0 %v944
        %946 = vmatprep.subr.mxu0 0.0
        %v947 = vand.u32 %v366, 4294901760
        %948 = vmatpush1.msra.mxu0 %v947
        %949 = vmatprep.subr.mxu0 0.0
        %950 = vmatpush1.msra.mxu0 0.0
        %951 = vmatprep.subr.mxu0 0.0
        %952 = vmatpush1.msra.mxu0 0.0
        %953 = vmatprep.subr.mxu0 0.0
        %954 = vmatpush1.msra.mxu0 0.0
        %955 = vmatprep.subr.mxu0 0.0
        %956 = vmatpush1.msra.mxu0 0.0
        %957 = vmatprep.subr.mxu0 0.0
        %958 = vmatpush1.msra.mxu0 0.0
        %959 = vmatprep.subr.mxu0 0.0
        %960 = vmatpush1.msra.mxu0 0.0
        %961 = vmatprep.subr.mxu0 0.0
        %962 = vmatpush1.msra.mxu0 0.0
        %963 = vmatprep.subr.mxu0 0.0
        %964 = vmatpush1.msra.mxu0 0.0
        %965 = vmatprep.subr.mxu0 0.0
        %966 = vmatpush1.msra.mxu0 0.0
        %967 = vmatprep.subr.mxu0 0.0
        %968 = vmatpush1.msra.mxu0 0.0
        %969 = vmatprep.subr.mxu0 0.0
        %970 = vmatpush1.msra.mxu0 0.0
        %971 = vmatprep.subr.mxu0 0.0
        %972 = vmatpush1.msra.mxu0 0.0
        %973 = vmatprep.subr.mxu0 0.0
        %974 = vmatpush1.msra.mxu0 0.0
        %975 = vmatprep.subr.mxu0 0.0
        %976 = vmatpush1.msra.mxu0 0.0
        %977 = vmatprep.subr.mxu0 0.0
        %978 = vmatpush1.msra.mxu0 0.0
        %979 = vmatprep.subr.mxu0 0.0
        %980 = vmatpush1.msra.mxu0 0.0
        %981 = vmatprep.subr.mxu0 0.0
        %982 = vmatpush1.msra.mxu0 0.0
        %983 = vmatprep.subr.mxu0 0.0
        %984 = vmatpush1.msra.mxu0 0.0
        %985 = vmatprep.subr.mxu0 0.0
        %986 = vmatpush1.msra.mxu0 0.0
        %987 = vmatprep.subr.mxu0 0.0
        %988 = vmatpush1.msra.mxu0 0.0
        %989 = vmatprep.subr.mxu0 0.0
        %990 = vmatpush1.msra.mxu0 0.0
        %991 = vmatprep.subr.mxu0 0.0
        %992 = vmatpush1.msra.mxu0 0.0
        %993 = vmatprep.subr.mxu0 0.0
        %994 = vmatpush1.msra.mxu0 0.0
        %995 = vmatprep.subr.mxu0 0.0
        %996 = vmatpush1.msra.mxu0 0.0
        %997 = vmatprep.subr.mxu0 0.0
        %998 = vmatpush1.msra.mxu0 0.0
        %999 = vmatprep.subr.mxu0 0.0
        %1000 = vmatpush1.msra.mxu0 0.0
        %1001 = vmatprep.subr.mxu0 0.0
        %1002 = vmatpush1.msra.mxu0 0.0
        %1003 = vmatprep.subr.mxu0 0.0
        %1004 = vmatpush1.msra.mxu0 0.0
        %1005 = vmatprep.mubr.f32.mxu0 0.0
        %v1006 = vand.u32 %v932, 4294901760
        %v1007 = vsub.f32 %v932, %v1006
        %v1008 = vand.u32 %v1007, 4294901760
        %v1009 = vsub.f32 %v1007, %v1008
        %v1010 = vand.u32 %v1009, 4294901760
        %1011 = vmatmul.mubr.f32.gmra.mrb[0].mxu0 %v1010
        %v1012 = vpop.f32.mrb[0].mxu0
        %v1013 = vadd.f32 %v929, %v1012
        %v1014 = vpop.f32.mrb[0].mxu0
        %1015 = vmatprep.mubr.f32.mxu0 0.0
        %v1016 = vand.u32 %v935, 4294901760
        %v1017 = vsub.f32 %v935, %v1016
        %v1018 = vand.u32 %v1017, 4294901760
        %v1019 = vsub.f32 %v1017, %v1018
        %v1020 = vand.u32 %v1019, 4294901760
        %1021 = vmatmul.mubr.f32.gmra.mrb[0].mxu0 %v1020
        %v1022 = vpop.f32.mrb[0].mxu0
        %v1023 = vadd.f32 %v930, %v1022
        %v1024 = vpop.f32.mrb[0].mxu0
        %1025 = vdwg.mxu0
        %1026 = vmatprep.subr.mxu0 0.0
        %v1027 = vand.u32 %v363, 4294901760
        %v1028 = vsub.f32 %v363, %v1027
        %v1029 = vand.u32 %v1028, 4294901760
        %v1030 = vsub.f32 %v1028, %v1029
        %v1031 = vand.u32 %v1030, 4294901760
        %1032 = vmatpush1.msra.mxu0 %v1031
        %1033 = vmatprep.subr.mxu0 0.0
        %v1034 = vand.u32 %v364, 4294901760
        %v1035 = vsub.f32 %v364, %v1034
        %v1036 = vand.u32 %v1035, 4294901760
        %v1037 = vsub.f32 %v1035, %v1036
        %v1038 = vand.u32 %v1037, 4294901760
        %1039 = vmatpush1.msra.mxu0 %v1038
        %1040 = vmatprep.subr.mxu0 0.0
        %v1041 = vand.u32 %v365, 4294901760
        %v1042 = vsub.f32 %v365, %v1041
        %v1043 = vand.u32 %v1042, 4294901760
        %v1044 = vsub.f32 %v1042, %v1043
        %v1045 = vand.u32 %v1044, 4294901760
        %1046 = vmatpush1.msra.mxu0 %v1045
        %1047 = vmatprep.subr.mxu0 0.0
        %v1048 = vand.u32 %v366, 4294901760
        %v1049 = vsub.f32 %v366, %v1048
        %v1050 = vand.u32 %v1049, 4294901760
        %v1051 = vsub.f32 %v1049, %v1050
        %v1052 = vand.u32 %v1051, 4294901760
        %1053 = vmatpush1.msra.mxu0 %v1052
        %1054 = vmatprep.subr.mxu0 0.0
        %1055 = vmatpush1.msra.mxu0 0.0
        %1056 = vmatprep.subr.mxu0 0.0
        %1057 = vmatpush1.msra.mxu0 0.0
        %1058 = vmatprep.subr.mxu0 0.0
        %1059 = vmatpush1.msra.mxu0 0.0
        %1060 = vmatprep.subr.mxu0 0.0
        %1061 = vmatpush1.msra.mxu0 0.0
        %1062 = vmatprep.subr.mxu0 0.0
        %1063 = vmatpush1.msra.mxu0 0.0
        %1064 = vmatprep.subr.mxu0 0.0
        %1065 = vmatpush1.msra.mxu0 0.0
        %1066 = vmatprep.subr.mxu0 0.0
        %1067 = vmatpush1.msra.mxu0 0.0
        %1068 = vmatprep.subr.mxu0 0.0
        %1069 = vmatpush1.msra.mxu0 0.0
        %1070 = vmatprep.subr.mxu0 0.0
        %1071 = vmatpush1.msra.mxu0 0.0
        %1072 = vmatprep.subr.mxu0 0.0
        %1073 = vmatpush1.msra.mxu0 0.0
        %1074 = vmatprep.subr.mxu0 0.0
        %1075 = vmatpush1.msra.mxu0 0.0
        %1076 = vmatprep.subr.mxu0 0.0
        %1077 = vmatpush1.msra.mxu0 0.0
        %1078 = vmatprep.subr.mxu0 0.0
        %1079 = vmatpush1.msra.mxu0 0.0
        %1080 = vmatprep.subr.mxu0 0.0
        %1081 = vmatpush1.msra.mxu0 0.0
        %1082 = vmatprep.subr.mxu0 0.0
        %1083 = vmatpush1.msra.mxu0 0.0
        %1084 = vmatprep.subr.mxu0 0.0
        %1085 = vmatpush1.msra.mxu0 0.0
        %1086 = vmatprep.subr.mxu0 0.0
        %1087 = vmatpush1.msra.mxu0 0.0
        %1088 = vmatprep.subr.mxu0 0.0
        %1089 = vmatpush1.msra.mxu0 0.0
        %1090 = vmatprep.subr.mxu0 0.0
        %1091 = vmatpush1.msra.mxu0 0.0
        %1092 = vmatprep.subr.mxu0 0.0
        %1093 = vmatpush1.msra.mxu0 0.0
        %1094 = vmatprep.subr.mxu0 0.0
        %1095 = vmatpush1.msra.mxu0 0.0
        %1096 = vmatprep.subr.mxu0 0.0
        %1097 = vmatpush1.msra.mxu0 0.0
        %1098 = vmatprep.subr.mxu0 0.0
        %1099 = vmatpush1.msra.mxu0 0.0
        %1100 = vmatprep.subr.mxu0 0.0
        %1101 = vmatpush1.msra.mxu0 0.0
        %1102 = vmatprep.subr.mxu0 0.0
        %1103 = vmatpush1.msra.mxu0 0.0
        %1104 = vmatprep.subr.mxu0 0.0
        %1105 = vmatpush1.msra.mxu0 0.0
        %1106 = vmatprep.subr.mxu0 0.0
        %1107 = vmatpush1.msra.mxu0 0.0
        %1108 = vmatprep.subr.mxu0 0.0
        %1109 = vmatpush1.msra.mxu0 0.0
        %1110 = vmatprep.mubr.f32.mxu0 0.0
        %v1111 = vand.u32 %v932, 4294901760
        %1112 = vmatmul.mubr.f32.gmra.mrb[0].mxu0 %v1111
        %v1113 = vpop.f32.mrb[0].mxu0
        %v1114 = vadd.f32 %v1013, %v1113
        %v1115 = vpop.f32.mrb[0].mxu0
        %1116 = vmatprep.mubr.f32.mxu0 0.0
        %v1117 = vand.u32 %v935, 4294901760
        %1118 = vmatmul.mubr.f32.gmra.mrb[0].mxu0 %v1117
        %v1119 = vpop.f32.mrb[0].mxu0
        %v1120 = vadd.f32 %v1023, %v1119
        %v1121 = vpop.f32.mrb[0].mxu0
        %1122 = vdwg.mxu0
        %1123 = vmatprep.subr.mxu0 0.0
        %v1124 = vand.u32 %v363, 4294901760
        %v1125 = vsub.f32 %v363, %v1124
        %1126 = vmatpush1.msra.mxu0 %v1125
        %1127 = vmatprep.subr.mxu0 0.0
        %v1128 = vand.u32 %v364, 4294901760
        %v1129 = vsub.f32 %v364, %v1128
        %1130 = vmatpush1.msra.mxu0 %v1129
        %1131 = vmatprep.subr.mxu0 0.0
        %v1132 = vand.u32 %v365, 4294901760
        %v1133 = vsub.f32 %v365, %v1132
        %1134 = vmatpush1.msra.mxu0 %v1133
        %1135 = vmatprep.subr.mxu0 0.0
        %v1136 = vand.u32 %v366, 4294901760
        %v1137 = vsub.f32 %v366, %v1136
        %1138 = vmatpush1.msra.mxu0 %v1137
        %1139 = vmatprep.subr.mxu0 0.0
        %1140 = vmatpush1.msra.mxu0 0.0
        %1141 = vmatprep.subr.mxu0 0.0
        %1142 = vmatpush1.msra.mxu0 0.0
        %1143 = vmatprep.subr.mxu0 0.0
        %1144 = vmatpush1.msra.mxu0 0.0
        %1145 = vmatprep.subr.mxu0 0.0
        %1146 = vmatpush1.msra.mxu0 0.0
        %1147 = vmatprep.subr.mxu0 0.0
        %1148 = vmatpush1.msra.mxu0 0.0
        %1149 = vmatprep.subr.mxu0 0.0
        %1150 = vmatpush1.msra.mxu0 0.0
        %1151 = vmatprep.subr.mxu0 0.0
        %1152 = vmatpush1.msra.mxu0 0.0
        %1153 = vmatprep.subr.mxu0 0.0
        %1154 = vmatpush1.msra.mxu0 0.0
        %1155 = vmatprep.subr.mxu0 0.0
        %1156 = vmatpush1.msra.mxu0 0.0
        %1157 = vmatprep.subr.mxu0 0.0
        %1158 = vmatpush1.msra.mxu0 0.0
        %1159 = vmatprep.subr.mxu0 0.0
        %1160 = vmatpush1.msra.mxu0 0.0
        %1161 = vmatprep.subr.mxu0 0.0
        %1162 = vmatpush1.msra.mxu0 0.0
        %1163 = vmatprep.subr.mxu0 0.0
        %1164 = vmatpush1.msra.mxu0 0.0
        %1165 = vmatprep.subr.mxu0 0.0
        %1166 = vmatpush1.msra.mxu0 0.0
        %1167 = vmatprep.subr.mxu0 0.0
        %1168 = vmatpush1.msra.mxu0 0.0
        %1169 = vmatprep.subr.mxu0 0.0
        %1170 = vmatpush1.msra.mxu0 0.0
        %1171 = vmatprep.subr.mxu0 0.0
        %1172 = vmatpush1.msra.mxu0 0.0
        %1173 = vmatprep.subr.mxu0 0.0
        %1174 = vmatpush1.msra.mxu0 0.0
        %1175 = vmatprep.subr.mxu0 0.0
        %1176 = vmatpush1.msra.mxu0 0.0
        %1177 = vmatprep.subr.mxu0 0.0
        %1178 = vmatpush1.msra.mxu0 0.0
        %1179 = vmatprep.subr.mxu0 0.0
        %1180 = vmatpush1.msra.mxu0 0.0
        %1181 = vmatprep.subr.mxu0 0.0
        %1182 = vmatpush1.msra.mxu0 0.0
        %1183 = vmatprep.subr.mxu0 0.0
        %1184 = vmatpush1.msra.mxu0 0.0
        %1185 = vmatprep.subr.mxu0 0.0
        %1186 = vmatpush1.msra.mxu0 0.0
        %1187 = vmatprep.subr.mxu0 0.0
        %1188 = vmatpush1.msra.mxu0 0.0
        %1189 = vmatprep.subr.mxu0 0.0
        %1190 = vmatpush1.msra.mxu0 0.0
        %1191 = vmatprep.subr.mxu0 0.0
        %1192 = vmatpush1.msra.mxu0 0.0
        %1193 = vmatprep.subr.mxu0 0.0
        %1194 = vmatpush1.msra.mxu0 0.0
        %1195 = vmatprep.mubr.f32.mxu0 0.0
        %v1196 = vand.u32 %v932, 4294901760
        %v1197 = vsub.f32 %v932, %v1196
        %1198 = vmatmul.mubr.f32.gmra.mrb[0].mxu0 %v1197
        %v1199 = vpop.f32.mrb[0].mxu0
        %v1200 = vadd.f32 %v1114, %v1199
        %v1201 = vpop.f32.mrb[0].mxu0
        %1202 = vmatprep.mubr.f32.mxu0 0.0
        %v1203 = vand.u32 %v935, 4294901760
        %v1204 = vsub.f32 %v935, %v1203
        %1205 = vmatmul.mubr.f32.gmra.mrb[0].mxu0 %v1204
        %v1206 = vpop.f32.mrb[0].mxu0
        %v1207 = vadd.f32 %v1120, %v1206
        %v1208 = vpop.f32.mrb[0].mxu0
        %1209 = vdwg.mxu0
        %1210 = vmatprep.subr.mxu0 0.0
        %v1211 = vand.u32 %v363, 4294901760
        %1212 = vmatpush1.msra.mxu0 %v1211
        %1213 = vmatprep.subr.mxu0 0.0
        %v1214 = vand.u32 %v364, 4294901760
        %1215 = vmatpush1.msra.mxu0 %v1214
        %1216 = vmatprep.subr.mxu0 0.0
        %v1217 = vand.u32 %v365, 4294901760
        %1218 = vmatpush1.msra.mxu0 %v1217
        %1219 = vmatprep.subr.mxu0 0.0
        %v1220 = vand.u32 %v366, 4294901760
        %1221 = vmatpush1.msra.mxu0 %v1220
        %1222 = vmatprep.subr.mxu0 0.0
        %1223 = vmatpush1.msra.mxu0 0.0
        %1224 = vmatprep.subr.mxu0 0.0
        %1225 = vmatpush1.msra.mxu0 0.0
        %1226 = vmatprep.subr.mxu0 0.0
        %1227 = vmatpush1.msra.mxu0 0.0
        %1228 = vmatprep.subr.mxu0 0.0
        %1229 = vmatpush1.msra.mxu0 0.0
        %1230 = vmatprep.subr.mxu0 0.0
        %1231 = vmatpush1.msra.mxu0 0.0
        %1232 = vmatprep.subr.mxu0 0.0
        %1233 = vmatpush1.msra.mxu0 0.0
        %1234 = vmatprep.subr.mxu0 0.0
        %1235 = vmatpush1.msra.mxu0 0.0
        %1236 = vmatprep.subr.mxu0 0.0
        %1237 = vmatpush1.msra.mxu0 0.0
        %1238 = vmatprep.subr.mxu0 0.0
        %1239 = vmatpush1.msra.mxu0 0.0
        %1240 = vmatprep.subr.mxu0 0.0
        %1241 = vmatpush1.msra.mxu0 0.0
        %1242 = vmatprep.subr.mxu0 0.0
        %1243 = vmatpush1.msra.mxu0 0.0
        %1244 = vmatprep.subr.mxu0 0.0
        %1245 = vmatpush1.msra.mxu0 0.0
        %1246 = vmatprep.subr.mxu0 0.0
        %1247 = vmatpush1.msra.mxu0 0.0
        %1248 = vmatprep.subr.mxu0 0.0
        %1249 = vmatpush1.msra.mxu0 0.0
        %1250 = vmatprep.subr.mxu0 0.0
        %1251 = vmatpush1.msra.mxu0 0.0
        %1252 = vmatprep.subr.mxu0 0.0
        %1253 = vmatpush1.msra.mxu0 0.0
        %1254 = vmatprep.subr.mxu0 0.0
        %1255 = vmatpush1.msra.mxu0 0.0
        %1256 = vmatprep.subr.mxu0 0.0
        %1257 = vmatpush1.msra.mxu0 0.0
        %1258 = vmatprep.subr.mxu0 0.0
        %1259 = vmatpush1.msra.mxu0 0.0
        %1260 = vmatprep.subr.mxu0 0.0
        %1261 = vmatpush1.msra.mxu0 0.0
        %1262 = vmatprep.subr.mxu0 0.0
        %1263 = vmatpush1.msra.mxu0 0.0
        %1264 = vmatprep.subr.mxu0 0.0
        %1265 = vmatpush1.msra.mxu0 0.0
        %1266 = vmatprep.subr.mxu0 0.0
        %1267 = vmatpush1.msra.mxu0 0.0
        %1268 = vmatprep.subr.mxu0 0.0
        %1269 = vmatpush1.msra.mxu0 0.0
        %1270 = vmatprep.subr.mxu0 0.0
        %1271 = vmatpush1.msra.mxu0 0.0
        %1272 = vmatprep.subr.mxu0 0.0
        %1273 = vmatpush1.msra.mxu0 0.0
        %1274 = vmatprep.subr.mxu0 0.0
        %1275 = vmatpush1.msra.mxu0 0.0
        %1276 = vmatprep.subr.mxu0 0.0
        %1277 = vmatpush1.msra.mxu0 0.0
        %1278 = vmatprep.mubr.f32.mxu0 0.0
        %v1279 = vand.u32 %v932, 4294901760
        %v1280 = vsub.f32 %v932, %v1279
        %v1281 = vand.u32 %v1280, 4294901760
        %1282 = vmatmul.mubr.f32.gmra.mrb[0].mxu0 %v1281
        %v1283 = vpop.f32.mrb[0].mxu0
        %v1284 = vadd.f32 %v1200, %v1283
        %v1285 = vpop.f32.mrb[0].mxu0
        %1286 = vmatprep.mubr.f32.mxu0 0.0
        %v1287 = vand.u32 %v935, 4294901760
        %v1288 = vsub.f32 %v935, %v1287
        %v1289 = vand.u32 %v1288, 4294901760
        %1290 = vmatmul.mubr.f32.gmra.mrb[0].mxu0 %v1289
        %v1291 = vpop.f32.mrb[0].mxu0
        %v1292 = vadd.f32 %v1207, %v1291
        %v1293 = vpop.f32.mrb[0].mxu0
        %1294 = vdwg.mxu0
        %1295 = vmatprep.subr.mxu0 0.0
        %v1296 = vand.u32 %v363, 4294901760
        %v1297 = vsub.f32 %v363, %v1296
        %v1298 = vand.u32 %v1297, 4294901760
        %1299 = vmatpush1.msra.mxu0 %v1298
        %1300 = vmatprep.subr.mxu0 0.0
        %v1301 = vand.u32 %v364, 4294901760
        %v1302 = vsub.f32 %v364, %v1301
        %v1303 = vand.u32 %v1302, 4294901760
        %1304 = vmatpush1.msra.mxu0 %v1303
        %1305 = vmatprep.subr.mxu0 0.0
        %v1306 = vand.u32 %v365, 4294901760
        %v1307 = vsub.f32 %v365, %v1306
        %v1308 = vand.u32 %v1307, 4294901760
        %1309 = vmatpush1.msra.mxu0 %v1308
        %1310 = vmatprep.subr.mxu0 0.0
        %v1311 = vand.u32 %v366, 4294901760
        %v1312 = vsub.f32 %v366, %v1311
        %v1313 = vand.u32 %v1312, 4294901760
        %1314 = vmatpush1.msra.mxu0 %v1313
        %1315 = vmatprep.subr.mxu0 0.0
        %1316 = vmatpush1.msra.mxu0 0.0
        %1317 = vmatprep.subr.mxu0 0.0
        %1318 = vmatpush1.msra.mxu0 0.0
        %1319 = vmatprep.subr.mxu0 0.0
        %1320 = vmatpush1.msra.mxu0 0.0
        %1321 = vmatprep.subr.mxu0 0.0
        %1322 = vmatpush1.msra.mxu0 0.0
        %1323 = vmatprep.subr.mxu0 0.0
        %1324 = vmatpush1.msra.mxu0 0.0
        %1325 = vmatprep.subr.mxu0 0.0
        %1326 = vmatpush1.msra.mxu0 0.0
        %1327 = vmatprep.subr.mxu0 0.0
        %1328 = vmatpush1.msra.mxu0 0.0
        %1329 = vmatprep.subr.mxu0 0.0
        %1330 = vmatpush1.msra.mxu0 0.0
        %1331 = vmatprep.subr.mxu0 0.0
        %1332 = vmatpush1.msra.mxu0 0.0
        %1333 = vmatprep.subr.mxu0 0.0
        %1334 = vmatpush1.msra.mxu0 0.0
        %1335 = vmatprep.subr.mxu0 0.0
        %1336 = vmatpush1.msra.mxu0 0.0
        %1337 = vmatprep.subr.mxu0 0.0
        %1338 = vmatpush1.msra.mxu0 0.0
        %1339 = vmatprep.subr.mxu0 0.0
        %1340 = vmatpush1.msra.mxu0 0.0
        %1341 = vmatprep.subr.mxu0 0.0
        %1342 = vmatpush1.msra.mxu0 0.0
        %1343 = vmatprep.subr.mxu0 0.0
        %1344 = vmatpush1.msra.mxu0 0.0
        %1345 = vmatprep.subr.mxu0 0.0
        %1346 = vmatpush1.msra.mxu0 0.0
        %1347 = vmatprep.subr.mxu0 0.0
        %1348 = vmatpush1.msra.mxu0 0.0
        %1349 = vmatprep.subr.mxu0 0.0
        %1350 = vmatpush1.msra.mxu0 0.0
        %1351 = vmatprep.subr.mxu0 0.0
        %1352 = vmatpush1.msra.mxu0 0.0
        %1353 = vmatprep.subr.mxu0 0.0
        %1354 = vmatpush1.msra.mxu0 0.0
        %1355 = vmatprep.subr.mxu0 0.0
        %1356 = vmatpush1.msra.mxu0 0.0
        %1357 = vmatprep.subr.mxu0 0.0
        %1358 = vmatpush1.msra.mxu0 0.0
        %1359 = vmatprep.subr.mxu0 0.0
        %1360 = vmatpush1.msra.mxu0 0.0
        %1361 = vmatprep.subr.mxu0 0.0
        %1362 = vmatpush1.msra.mxu0 0.0
        %1363 = vmatprep.subr.mxu0 0.0
        %1364 = vmatpush1.msra.mxu0 0.0
        %1365 = vmatprep.subr.mxu0 0.0
        %1366 = vmatpush1.msra.mxu0 0.0
        %1367 = vmatprep.subr.mxu0 0.0
        %1368 = vmatpush1.msra.mxu0 0.0
        %1369 = vmatprep.subr.mxu0 0.0
        %1370 = vmatpush1.msra.mxu0 0.0
        %1371 = vmatprep.mubr.f32.mxu0 0.0
        %v1372 = vand.u32 %v932, 4294901760
        %1373 = vmatmul.mubr.f32.gmra.mrb[0].mxu0 %v1372
        %v1374 = vpop.f32.mrb[0].mxu0
        %v1375 = vadd.f32 %v1284, %v1374
        %v1376 = vpop.f32.mrb[0].mxu0
        %1377 = vmatprep.mubr.f32.mxu0 0.0
        %v1378 = vand.u32 %v935, 4294901760
        %1379 = vmatmul.mubr.f32.gmra.mrb[0].mxu0 %v1378
        %v1380 = vpop.f32.mrb[0].mxu0
        %v1381 = vadd.f32 %v1292, %v1380
        %v1382 = vpop.f32.mrb[0].mxu0
        %1383 = vdwg.mxu0
        %1384 = vmatprep.subr.mxu0 0.0
        %v1385 = vand.u32 %v363, 4294901760
        %1386 = vmatpush1.msra.mxu0 %v1385
        %1387 = vmatprep.subr.mxu0 0.0
        %v1388 = vand.u32 %v364, 4294901760
        %1389 = vmatpush1.msra.mxu0 %v1388
        %1390 = vmatprep.subr.mxu0 0.0
        %v1391 = vand.u32 %v365, 4294901760
        %1392 = vmatpush1.msra.mxu0 %v1391
        %1393 = vmatprep.subr.mxu0 0.0
        %v1394 = vand.u32 %v366, 4294901760
        %1395 = vmatpush1.msra.mxu0 %v1394
        %1396 = vmatprep.subr.mxu0 0.0
        %1397 = vmatpush1.msra.mxu0 0.0
        %1398 = vmatprep.subr.mxu0 0.0
        %1399 = vmatpush1.msra.mxu0 0.0
        %1400 = vmatprep.subr.mxu0 0.0
        %1401 = vmatpush1.msra.mxu0 0.0
        %1402 = vmatprep.subr.mxu0 0.0
        %1403 = vmatpush1.msra.mxu0 0.0
        %1404 = vmatprep.subr.mxu0 0.0
        %1405 = vmatpush1.msra.mxu0 0.0
        %1406 = vmatprep.subr.mxu0 0.0
        %1407 = vmatpush1.msra.mxu0 0.0
        %1408 = vmatprep.subr.mxu0 0.0
        %1409 = vmatpush1.msra.mxu0 0.0
        %1410 = vmatprep.subr.mxu0 0.0
        %1411 = vmatpush1.msra.mxu0 0.0
        %1412 = vmatprep.subr.mxu0 0.0
        %1413 = vmatpush1.msra.mxu0 0.0
        %1414 = vmatprep.subr.mxu0 0.0
        %1415 = vmatpush1.msra.mxu0 0.0
        %1416 = vmatprep.subr.mxu0 0.0
        %1417 = vmatpush1.msra.mxu0 0.0
        %1418 = vmatprep.subr.mxu0 0.0
        %1419 = vmatpush1.msra.mxu0 0.0
        %1420 = vmatprep.subr.mxu0 0.0
        %1421 = vmatpush1.msra.mxu0 0.0
        %1422 = vmatprep.subr.mxu0 0.0
        %1423 = vmatpush1.msra.mxu0 0.0
        %1424 = vmatprep.subr.mxu0 0.0
        %1425 = vmatpush1.msra.mxu0 0.0
        %1426 = vmatprep.subr.mxu0 0.0
        %1427 = vmatpush1.msra.mxu0 0.0
        %1428 = vmatprep.subr.mxu0 0.0
        %1429 = vmatpush1.msra.mxu0 0.0
        %1430 = vmatprep.subr.mxu0 0.0
        %1431 = vmatpush1.msra.mxu0 0.0
        %1432 = vmatprep.subr.mxu0 0.0
        %1433 = vmatpush1.msra.mxu0 0.0
        %1434 = vmatprep.subr.mxu0 0.0
        %1435 = vmatpush1.msra.mxu0 0.0
        %1436 = vmatprep.subr.mxu0 0.0
        %1437 = vmatpush1.msra.mxu0 0.0
        %1438 = vmatprep.subr.mxu0 0.0
        %1439 = vmatpush1.msra.mxu0 0.0
        %1440 = vmatprep.subr.mxu0 0.0
        %1441 = vmatpush1.msra.mxu0 0.0
        %1442 = vmatprep.subr.mxu0 0.0
        %1443 = vmatpush1.msra.mxu0 0.0
        %1444 = vmatprep.subr.mxu0 0.0
        %1445 = vmatpush1.msra.mxu0 0.0
        %1446 = vmatprep.subr.mxu0 0.0
        %1447 = vmatpush1.msra.mxu0 0.0
        %1448 = vmatprep.subr.mxu0 0.0
        %1449 = vmatpush1.msra.mxu0 0.0
        %1450 = vmatprep.subr.mxu0 0.0
        %1451 = vmatpush1.msra.mxu0 0.0
        %1452 = vmatprep.mubr.f32.mxu0 0.0
        %v1453 = vand.u32 %v932, 4294901760
        %1454 = vmatmul.mubr.f32.gmra.mrb[0].mxu0 %v1453
        %v1455 = vpop.f32.mrb[0].mxu0
        %v1456 = vadd.f32 %v1375, %v1455
        %v1457 = vpop.f32.mrb[0].mxu0
        %1458 = vmatprep.mubr.f32.mxu0 0.0
        %v1459 = vand.u32 %v935, 4294901760
        %1460 = vmatmul.mubr.f32.gmra.mrb[0].mxu0 %v1459
        %v1461 = vpop.f32.mrb[0].mxu0
        %v1462 = vadd.f32 %v1381, %v1461
        %v1463 = vpop.f32.mrb[0].mxu0
        %1464 = vdwg.mxu0
        %vm1465 = vcmask 130048
        %1466 = vst.msk [vmem:[%s354] sm:$0xff] %vm1465, %v1456
        %1467 = vst.msk [vmem:[%s354 + $0x8] sm:$0xff] %vm1465, %v1462
        %v1468 = vld [vmem:[%s313] sm:$0xff]
        %v1469 = vld [vmem:[%s313 + $0x8] sm:$0xff]
        %s1470 = scalar_lea.vmem %s354, 16 [#allocation7]
        %1471 = vst.msk [vmem:[%s1470] sm:$0xff] %vm1465, %v1468
        %1472 = vst.msk [vmem:[%s1470 + $0x8] sm:$0xff] %vm1465, %v1469
        %v1473 = vld [vmem:[%s362] sm:$0xff]
        %vm1474 = vcmask 64512
        %v1476 = vsel %vm1474, %v1473, 0
        %1478 = vmatprep.subr.mxu0 0.0
        %v1479 = vand.u32 %v371, 4294901760
        %1480 = vmatpush1.msra.mxu0 %v1479
        %1481 = vmatprep.subr.mxu0 0.0
        %1482 = vmatpush1.msra.mxu0 0.0
        %1483 = vmatprep.subr.mxu0 0.0
        %1484 = vmatpush1.msra.mxu0 0.0
        %1485 = vmatprep.subr.mxu0 0.0
        %1486 = vmatpush1.msra.mxu0 0.0
        %1487 = vmatprep.subr.mxu0 0.0
        %1488 = vmatpush1.msra.mxu0 0.0
        %1489 = vmatprep.subr.mxu0 0.0
        %1490 = vmatpush1.msra.mxu0 0.0
        %1491 = vmatprep.subr.mxu0 0.0
        %1492 = vmatpush1.msra.mxu0 0.0
        %1493 = vmatprep.subr.mxu0 0.0
        %1494 = vmatpush1.msra.mxu0 0.0
        %1495 = vmatprep.subr.mxu0 0.0
        %1496 = vmatpush1.msra.mxu0 0.0
        %1497 = vmatprep.subr.mxu0 0.0
        %1498 = vmatpush1.msra.mxu0 0.0
        %1499 = vmatprep.subr.mxu0 0.0
        %1500 = vmatpush1.msra.mxu0 0.0
        %1501 = vmatprep.subr.mxu0 0.0
        %1502 = vmatpush1.msra.mxu0 0.0
        %1503 = vmatprep.subr.mxu0 0.0
        %1504 = vmatpush1.msra.mxu0 0.0
        %1505 = vmatprep.subr.mxu0 0.0
        %1506 = vmatpush1.msra.mxu0 0.0
        %1507 = vmatprep.subr.mxu0 0.0
        %1508 = vmatpush1.msra.mxu0 0.0
        %1509 = vmatprep.subr.mxu0 0.0
        %1510 = vmatpush1.msra.mxu0 0.0
        %1511 = vmatprep.subr.mxu0 0.0
        %1512 = vmatpush1.msra.mxu0 0.0
        %1513 = vmatprep.subr.mxu0 0.0
        %1514 = vmatpush1.msra.mxu0 0.0
        %1515 = vmatprep.subr.mxu0 0.0
        %1516 = vmatpush1.msra.mxu0 0.0
        %1517 = vmatprep.subr.mxu0 0.0
        %1518 = vmatpush1.msra.mxu0 0.0
        %1519 = vmatprep.subr.mxu0 0.0
        %1520 = vmatpush1.msra.mxu0 0.0
        %1521 = vmatprep.subr.mxu0 0.0
        %1522 = vmatpush1.msra.mxu0 0.0
        %1523 = vmatprep.subr.mxu0 0.0
        %1524 = vmatpush1.msra.mxu0 0.0
        %1525 = vmatprep.subr.mxu0 0.0
        %1526 = vmatpush1.msra.mxu0 0.0
        %1527 = vmatprep.subr.mxu0 0.0
        %1528 = vmatpush1.msra.mxu0 0.0
        %1529 = vmatprep.subr.mxu0 0.0
        %1530 = vmatpush1.msra.mxu0 0.0
        %1531 = vmatprep.subr.mxu0 0.0
        %1532 = vmatpush1.msra.mxu0 0.0
        %1533 = vmatprep.subr.mxu0 0.0
        %1534 = vmatpush1.msra.mxu0 0.0
        %1535 = vmatprep.subr.mxu0 0.0
        %1536 = vmatpush1.msra.mxu0 0.0
        %1537 = vmatprep.subr.mxu0 0.0
        %1538 = vmatpush1.msra.mxu0 0.0
        %1539 = vmatprep.subr.mxu0 0.0
        %1540 = vmatpush1.msra.mxu0 0.0
        %1541 = vmatprep.subr.mxu0 0.0
        %1542 = vmatpush1.msra.mxu0 0.0
        %1543 = vmatprep.mubr.f32.mxu0 0.0
        %v1544 = vand.u32 %v1476, 4294901760
        %v1545 = vsub.f32 %v1476, %v1544
        %v1546 = vand.u32 %v1545, 4294901760
        %v1547 = vsub.f32 %v1545, %v1546
        %v1548 = vand.u32 %v1547, 4294901760
        %1549 = vmatmul.mubr.f32.gmra.mrb[0].mxu0 %v1548
        %v1550 = vpop.f32.mrb[0].mxu0
        %v1551 = vadd.f32 0.0, %v1550
        %v1552 = vpop.f32.mrb[0].mxu0
        %1553 = vdwg.mxu0
        %1554 = vmatprep.subr.mxu0 0.0
        %v1555 = vand.u32 %v371, 4294901760
        %v1556 = vsub.f32 %v371, %v1555
        %v1557 = vand.u32 %v1556, 4294901760
        %v1558 = vsub.f32 %v1556, %v1557
        %v1559 = vand.u32 %v1558, 4294901760
        %1560 = vmatpush1.msra.mxu0 %v1559
        %1561 = vmatprep.subr.mxu0 0.0
        %1562 = vmatpush1.msra.mxu0 0.0
        %1563 = vmatprep.subr.mxu0 0.0
        %1564 = vmatpush1.msra.mxu0 0.0
        %1565 = vmatprep.subr.mxu0 0.0
        %1566 = vmatpush1.msra.mxu0 0.0
        %1567 = vmatprep.subr.mxu0 0.0
        %1568 = vmatpush1.msra.mxu0 0.0
        %1569 = vmatprep.subr.mxu0 0.0
        %1570 = vmatpush1.msra.mxu0 0.0
        %1571 = vmatprep.subr.mxu0 0.0
        %1572 = vmatpush1.msra.mxu0 0.0
        %1573 = vmatprep.subr.mxu0 0.0
        %1574 = vmatpush1.msra.mxu0 0.0
        %1575 = vmatprep.subr.mxu0 0.0
        %1576 = vmatpush1.msra.mxu0 0.0
        %1577 = vmatprep.subr.mxu0 0.0
        %1578 = vmatpush1.msra.mxu0 0.0
        %1579 = vmatprep.subr.mxu0 0.0
        %1580 = vmatpush1.msra.mxu0 0.0
        %1581 = vmatprep.subr.mxu0 0.0
        %1582 = vmatpush1.msra.mxu0 0.0
        %1583 = vmatprep.subr.mxu0 0.0
        %1584 = vmatpush1.msra.mxu0 0.0
        %1585 = vmatprep.subr.mxu0 0.0
        %1586 = vmatpush1.msra.mxu0 0.0
        %1587 = vmatprep.subr.mxu0 0.0
        %1588 = vmatpush1.msra.mxu0 0.0
        %1589 = vmatprep.subr.mxu0 0.0
        %1590 = vmatpush1.msra.mxu0 0.0
        %1591 = vmatprep.subr.mxu0 0.0
        %1592 = vmatpush1.msra.mxu0 0.0
        %1593 = vmatprep.subr.mxu0 0.0
        %1594 = vmatpush1.msra.mxu0 0.0
        %1595 = vmatprep.subr.mxu0 0.0
        %1596 = vmatpush1.msra.mxu0 0.0
        %1597 = vmatprep.subr.mxu0 0.0
        %1598 = vmatpush1.msra.mxu0 0.0
        %1599 = vmatprep.subr.mxu0 0.0
        %1600 = vmatpush1.msra.mxu0 0.0
        %1601 = vmatprep.subr.mxu0 0.0
        %1602 = vmatpush1.msra.mxu0 0.0
        %1603 = vmatprep.subr.mxu0 0.0
        %1604 = vmatpush1.msra.mxu0 0.0
        %1605 = vmatprep.subr.mxu0 0.0
        %1606 = vmatpush1.msra.mxu0 0.0
        %1607 = vmatprep.subr.mxu0 0.0
        %1608 = vmatpush1.msra.mxu0 0.0
        %1609 = vmatprep.subr.mxu0 0.0
        %1610 = vmatpush1.msra.mxu0 0.0
        %1611 = vmatprep.subr.mxu0 0.0
        %1612 = vmatpush1.msra.mxu0 0.0
        %1613 = vmatprep.subr.mxu0 0.0
        %1614 = vmatpush1.msra.mxu0 0.0
        %1615 = vmatprep.subr.mxu0 0.0
        %1616 = vmatpush1.msra.mxu0 0.0
        %1617 = vmatprep.subr.mxu0 0.0
        %1618 = vmatpush1.msra.mxu0 0.0
        %1619 = vmatprep.subr.mxu0 0.0
        %1620 = vmatpush1.msra.mxu0 0.0
        %1621 = vmatprep.subr.mxu0 0.0
        %1622 = vmatpush1.msra.mxu0 0.0
        %1623 = vmatprep.mubr.f32.mxu0 0.0
        %v1624 = vand.u32 %v1476, 4294901760
        %1625 = vmatmul.mubr.f32.gmra.mrb[0].mxu0 %v1624
        %v1626 = vpop.f32.mrb[0].mxu0
        %v1627 = vadd.f32 %v1551, %v1626
        %v1628 = vpop.f32.mrb[0].mxu0
        %1629 = vdwg.mxu0
        %1630 = vmatprep.subr.mxu0 0.0
        %v1631 = vand.u32 %v371, 4294901760
        %v1632 = vsub.f32 %v371, %v1631
        %1633 = vmatpush1.msra.mxu0 %v1632
        %1634 = vmatprep.subr.mxu0 0.0
        %1635 = vmatpush1.msra.mxu0 0.0
        %1636 = vmatprep.subr.mxu0 0.0
        %1637 = vmatpush1.msra.mxu0 0.0
        %1638 = vmatprep.subr.mxu0 0.0
        %1639 = vmatpush1.msra.mxu0 0.0
        %1640 = vmatprep.subr.mxu0 0.0
        %1641 = vmatpush1.msra.mxu0 0.0
        %1642 = vmatprep.subr.mxu0 0.0
        %1643 = vmatpush1.msra.mxu0 0.0
        %1644 = vmatprep.subr.mxu0 0.0
        %1645 = vmatpush1.msra.mxu0 0.0
        %1646 = vmatprep.subr.mxu0 0.0
        %1647 = vmatpush1.msra.mxu0 0.0
        %1648 = vmatprep.subr.mxu0 0.0
        %1649 = vmatpush1.msra.mxu0 0.0
        %1650 = vmatprep.subr.mxu0 0.0
        %1651 = vmatpush1.msra.mxu0 0.0
        %1652 = vmatprep.subr.mxu0 0.0
        %1653 = vmatpush1.msra.mxu0 0.0
        %1654 = vmatprep.subr.mxu0 0.0
        %1655 = vmatpush1.msra.mxu0 0.0
        %1656 = vmatprep.subr.mxu0 0.0
        %1657 = vmatpush1.msra.mxu0 0.0
        %1658 = vmatprep.subr.mxu0 0.0
        %1659 = vmatpush1.msra.mxu0 0.0
        %1660 = vmatprep.subr.mxu0 0.0
        %1661 = vmatpush1.msra.mxu0 0.0
        %1662 = vmatprep.subr.mxu0 0.0
        %1663 = vmatpush1.msra.mxu0 0.0
        %1664 = vmatprep.subr.mxu0 0.0
        %1665 = vmatpush1.msra.mxu0 0.0
        %1666 = vmatprep.subr.mxu0 0.0
        %1667 = vmatpush1.msra.mxu0 0.0
        %1668 = vmatprep.subr.mxu0 0.0
        %1669 = vmatpush1.msra.mxu0 0.0
        %1670 = vmatprep.subr.mxu0 0.0
        %1671 = vmatpush1.msra.mxu0 0.0
        %1672 = vmatprep.subr.mxu0 0.0
        %1673 = vmatpush1.msra.mxu0 0.0
        %1674 = vmatprep.subr.mxu0 0.0
        %1675 = vmatpush1.msra.mxu0 0.0
        %1676 = vmatprep.subr.mxu0 0.0
        %1677 = vmatpush1.msra.mxu0 0.0
        %1678 = vmatprep.subr.mxu0 0.0
        %1679 = vmatpush1.msra.mxu0 0.0
        %1680 = vmatprep.subr.mxu0 0.0
        %1681 = vmatpush1.msra.mxu0 0.0
        %1682 = vmatprep.subr.mxu0 0.0
        %1683 = vmatpush1.msra.mxu0 0.0
        %1684 = vmatprep.subr.mxu0 0.0
        %1685 = vmatpush1.msra.mxu0 0.0
        %1686 = vmatprep.subr.mxu0 0.0
        %1687 = vmatpush1.msra.mxu0 0.0
        %1688 = vmatprep.subr.mxu0 0.0
        %1689 = vmatpush1.msra.mxu0 0.0
        %1690 = vmatprep.subr.mxu0 0.0
        %1691 = vmatpush1.msra.mxu0 0.0
        %1692 = vmatprep.subr.mxu0 0.0
        %1693 = vmatpush1.msra.mxu0 0.0
        %1694 = vmatprep.subr.mxu0 0.0
        %1695 = vmatpush1.msra.mxu0 0.0
        %1696 = vmatprep.mubr.f32.mxu0 0.0
        %v1697 = vand.u32 %v1476, 4294901760
        %v1698 = vsub.f32 %v1476, %v1697
        %1699 = vmatmul.mubr.f32.gmra.mrb[0].mxu0 %v1698
        %v1700 = vpop.f32.mrb[0].mxu0
        %v1701 = vadd.f32 %v1627, %v1700
        %v1702 = vpop.f32.mrb[0].mxu0
        %1703 = vdwg.mxu0
        %1704 = vmatprep.subr.mxu0 0.0
        %v1705 = vand.u32 %v371, 4294901760
        %1706 = vmatpush1.msra.mxu0 %v1705
        %1707 = vmatprep.subr.mxu0 0.0
        %1708 = vmatpush1.msra.mxu0 0.0
        %1709 = vmatprep.subr.mxu0 0.0
        %1710 = vmatpush1.msra.mxu0 0.0
        %1711 = vmatprep.subr.mxu0 0.0
        %1712 = vmatpush1.msra.mxu0 0.0
        %1713 = vmatprep.subr.mxu0 0.0
        %1714 = vmatpush1.msra.mxu0 0.0
        %1715 = vmatprep.subr.mxu0 0.0
        %1716 = vmatpush1.msra.mxu0 0.0
        %1717 = vmatprep.subr.mxu0 0.0
        %1718 = vmatpush1.msra.mxu0 0.0
        %1719 = vmatprep.subr.mxu0 0.0
        %1720 = vmatpush1.msra.mxu0 0.0
        %1721 = vmatprep.subr.mxu0 0.0
        %1722 = vmatpush1.msra.mxu0 0.0
        %1723 = vmatprep.subr.mxu0 0.0
        %1724 = vmatpush1.msra.mxu0 0.0
        %1725 = vmatprep.subr.mxu0 0.0
        %1726 = vmatpush1.msra.mxu0 0.0
        %1727 = vmatprep.subr.mxu0 0.0
        %1728 = vmatpush1.msra.mxu0 0.0
        %1729 = vmatprep.subr.mxu0 0.0
        %1730 = vmatpush1.msra.mxu0 0.0
        %1731 = vmatprep.subr.mxu0 0.0
        %1732 = vmatpush1.msra.mxu0 0.0
        %1733 = vmatprep.subr.mxu0 0.0
        %1734 = vmatpush1.msra.mxu0 0.0
        %1735 = vmatprep.subr.mxu0 0.0
        %1736 = vmatpush1.msra.mxu0 0.0
        %1737 = vmatprep.subr.mxu0 0.0
        %1738 = vmatpush1.msra.mxu0 0.0
        %1739 = vmatprep.subr.mxu0 0.0
        %1740 = vmatpush1.msra.mxu0 0.0
        %1741 = vmatprep.subr.mxu0 0.0
        %1742 = vmatpush1.msra.mxu0 0.0
        %1743 = vmatprep.subr.mxu0 0.0
        %1744 = vmatpush1.msra.mxu0 0.0
        %1745 = vmatprep.subr.mxu0 0.0
        %1746 = vmatpush1.msra.mxu0 0.0
        %1747 = vmatprep.subr.mxu0 0.0
        %1748 = vmatpush1.msra.mxu0 0.0
        %1749 = vmatprep.subr.mxu0 0.0
        %1750 = vmatpush1.msra.mxu0 0.0
        %1751 = vmatprep.subr.mxu0 0.0
        %1752 = vmatpush1.msra.mxu0 0.0
        %1753 = vmatprep.subr.mxu0 0.0
        %1754 = vmatpush1.msra.mxu0 0.0
        %1755 = vmatprep.subr.mxu0 0.0
        %1756 = vmatpush1.msra.mxu0 0.0
        %1757 = vmatprep.subr.mxu0 0.0
        %1758 = vmatpush1.msra.mxu0 0.0
        %1759 = vmatprep.subr.mxu0 0.0
        %1760 = vmatpush1.msra.mxu0 0.0
        %1761 = vmatprep.subr.mxu0 0.0
        %1762 = vmatpush1.msra.mxu0 0.0
        %1763 = vmatprep.subr.mxu0 0.0
        %1764 = vmatpush1.msra.mxu0 0.0
        %1765 = vmatprep.subr.mxu0 0.0
        %1766 = vmatpush1.msra.mxu0 0.0
        %1767 = vmatprep.subr.mxu0 0.0
        %1768 = vmatpush1.msra.mxu0 0.0
        %1769 = vmatprep.mubr.f32.mxu0 0.0
        %v1770 = vand.u32 %v1476, 4294901760
        %v1771 = vsub.f32 %v1476, %v1770
        %v1772 = vand.u32 %v1771, 4294901760
        %1773 = vmatmul.mubr.f32.gmra.mrb[0].mxu0 %v1772
        %v1774 = vpop.f32.mrb[0].mxu0
        %v1775 = vadd.f32 %v1701, %v1774
        %v1776 = vpop.f32.mrb[0].mxu0
        %1777 = vdwg.mxu0
        %1778 = vmatprep.subr.mxu0 0.0
        %v1779 = vand.u32 %v371, 4294901760
        %v1780 = vsub.f32 %v371, %v1779
        %v1781 = vand.u32 %v1780, 4294901760
        %1782 = vmatpush1.msra.mxu0 %v1781
        %1783 = vmatprep.subr.mxu0 0.0
        %1784 = vmatpush1.msra.mxu0 0.0
        %1785 = vmatprep.subr.mxu0 0.0
        %1786 = vmatpush1.msra.mxu0 0.0
        %1787 = vmatprep.subr.mxu0 0.0
        %1788 = vmatpush1.msra.mxu0 0.0
        %1789 = vmatprep.subr.mxu0 0.0
        %1790 = vmatpush1.msra.mxu0 0.0
        %1791 = vmatprep.subr.mxu0 0.0
        %1792 = vmatpush1.msra.mxu0 0.0
        %1793 = vmatprep.subr.mxu0 0.0
        %1794 = vmatpush1.msra.mxu0 0.0
        %1795 = vmatprep.subr.mxu0 0.0
        %1796 = vmatpush1.msra.mxu0 0.0
        %1797 = vmatprep.subr.mxu0 0.0
        %1798 = vmatpush1.msra.mxu0 0.0
        %1799 = vmatprep.subr.mxu0 0.0
        %1800 = vmatpush1.msra.mxu0 0.0
        %1801 = vmatprep.subr.mxu0 0.0
        %1802 = vmatpush1.msra.mxu0 0.0
        %1803 = vmatprep.subr.mxu0 0.0
        %1804 = vmatpush1.msra.mxu0 0.0
        %1805 = vmatprep.subr.mxu0 0.0
        %1806 = vmatpush1.msra.mxu0 0.0
        %1807 = vmatprep.subr.mxu0 0.0
        %1808 = vmatpush1.msra.mxu0 0.0
        %1809 = vmatprep.subr.mxu0 0.0
        %1810 = vmatpush1.msra.mxu0 0.0
        %1811 = vmatprep.subr.mxu0 0.0
        %1812 = vmatpush1.msra.mxu0 0.0
        %1813 = vmatprep.subr.mxu0 0.0
        %1814 = vmatpush1.msra.mxu0 0.0
        %1815 = vmatprep.subr.mxu0 0.0
        %1816 = vmatpush1.msra.mxu0 0.0
        %1817 = vmatprep.subr.mxu0 0.0
        %1818 = vmatpush1.msra.mxu0 0.0
        %1819 = vmatprep.subr.mxu0 0.0
        %1820 = vmatpush1.msra.mxu0 0.0
        %1821 = vmatprep.subr.mxu0 0.0
        %1822 = vmatpush1.msra.mxu0 0.0
        %1823 = vmatprep.subr.mxu0 0.0
        %1824 = vmatpush1.msra.mxu0 0.0
        %1825 = vmatprep.subr.mxu0 0.0
        %1826 = vmatpush1.msra.mxu0 0.0
        %1827 = vmatprep.subr.mxu0 0.0
        %1828 = vmatpush1.msra.mxu0 0.0
        %1829 = vmatprep.subr.mxu0 0.0
        %1830 = vmatpush1.msra.mxu0 0.0
        %1831 = vmatprep.subr.mxu0 0.0
        %1832 = vmatpush1.msra.mxu0 0.0
        %1833 = vmatprep.subr.mxu0 0.0
        %1834 = vmatpush1.msra.mxu0 0.0
        %1835 = vmatprep.subr.mxu0 0.0
        %1836 = vmatpush1.msra.mxu0 0.0
        %1837 = vmatprep.subr.mxu0 0.0
        %1838 = vmatpush1.msra.mxu0 0.0
        %1839 = vmatprep.subr.mxu0 0.0
        %1840 = vmatpush1.msra.mxu0 0.0
        %1841 = vmatprep.subr.mxu0 0.0
        %1842 = vmatpush1.msra.mxu0 0.0
        %1843 = vmatprep.subr.mxu0 0.0
        %1844 = vmatpush1.msra.mxu0 0.0
        %1845 = vmatprep.mubr.f32.mxu0 0.0
        %v1846 = vand.u32 %v1476, 4294901760
        %1847 = vmatmul.mubr.f32.gmra.mrb[0].mxu0 %v1846
        %v1848 = vpop.f32.mrb[0].mxu0
        %v1849 = vadd.f32 %v1775, %v1848
        %v1850 = vpop.f32.mrb[0].mxu0
        %1851 = vdwg.mxu0
        %1852 = vmatprep.subr.mxu0 0.0
        %v1853 = vand.u32 %v371, 4294901760
        %1854 = vmatpush1.msra.mxu0 %v1853
        %1855 = vmatprep.subr.mxu0 0.0
        %1856 = vmatpush1.msra.mxu0 0.0
        %1857 = vmatprep.subr.mxu0 0.0
        %1858 = vmatpush1.msra.mxu0 0.0
        %1859 = vmatprep.subr.mxu0 0.0
        %1860 = vmatpush1.msra.mxu0 0.0
        %1861 = vmatprep.subr.mxu0 0.0
        %1862 = vmatpush1.msra.mxu0 0.0
        %1863 = vmatprep.subr.mxu0 0.0
        %1864 = vmatpush1.msra.mxu0 0.0
        %1865 = vmatprep.subr.mxu0 0.0
        %1866 = vmatpush1.msra.mxu0 0.0
        %1867 = vmatprep.subr.mxu0 0.0
        %1868 = vmatpush1.msra.mxu0 0.0
        %1869 = vmatprep.subr.mxu0 0.0
        %1870 = vmatpush1.msra.mxu0 0.0
        %1871 = vmatprep.subr.mxu0 0.0
        %1872 = vmatpush1.msra.mxu0 0.0
        %1873 = vmatprep.subr.mxu0 0.0
        %1874 = vmatpush1.msra.mxu0 0.0
        %1875 = vmatprep.subr.mxu0 0.0
        %1876 = vmatpush1.msra.mxu0 0.0
        %1877 = vmatprep.subr.mxu0 0.0
        %1878 = vmatpush1.msra.mxu0 0.0
        %1879 = vmatprep.subr.mxu0 0.0
        %1880 = vmatpush1.msra.mxu0 0.0
        %1881 = vmatprep.subr.mxu0 0.0
        %1882 = vmatpush1.msra.mxu0 0.0
        %1883 = vmatprep.subr.mxu0 0.0
        %1884 = vmatpush1.msra.mxu0 0.0
        %1885 = vmatprep.subr.mxu0 0.0
        %1886 = vmatpush1.msra.mxu0 0.0
        %1887 = vmatprep.subr.mxu0 0.0
        %1888 = vmatpush1.msra.mxu0 0.0
        %1889 = vmatprep.subr.mxu0 0.0
        %1890 = vmatpush1.msra.mxu0 0.0
        %1891 = vmatprep.subr.mxu0 0.0
        %1892 = vmatpush1.msra.mxu0 0.0
        %1893 = vmatprep.subr.mxu0 0.0
        %1894 = vmatpush1.msra.mxu0 0.0
        %1895 = vmatprep.subr.mxu0 0.0
        %1896 = vmatpush1.msra.mxu0 0.0
        %1897 = vmatprep.subr.mxu0 0.0
        %1898 = vmatpush1.msra.mxu0 0.0
        %1899 = vmatprep.subr.mxu0 0.0
        %1900 = vmatpush1.msra.mxu0 0.0
        %1901 = vmatprep.subr.mxu0 0.0
        %1902 = vmatpush1.msra.mxu0 0.0
        %1903 = vmatprep.subr.mxu0 0.0
        %1904 = vmatpush1.msra.mxu0 0.0
        %1905 = vmatprep.subr.mxu0 0.0
        %1906 = vmatpush1.msra.mxu0 0.0
        %1907 = vmatprep.subr.mxu0 0.0
        %1908 = vmatpush1.msra.mxu0 0.0
        %1909 = vmatprep.subr.mxu0 0.0
        %1910 = vmatpush1.msra.mxu0 0.0
        %1911 = vmatprep.subr.mxu0 0.0
        %1912 = vmatpush1.msra.mxu0 0.0
        %1913 = vmatprep.subr.mxu0 0.0
        %1914 = vmatpush1.msra.mxu0 0.0
        %1915 = vmatprep.subr.mxu0 0.0
        %1916 = vmatpush1.msra.mxu0 0.0
        %1917 = vmatprep.mubr.f32.mxu0 0.0
        %v1918 = vand.u32 %v1476, 4294901760
        %1919 = vmatmul.mubr.f32.gmra.mrb[0].mxu0 %v1918
        %v1920 = vpop.f32.mrb[0].mxu0
        %v1921 = vadd.f32 %v1849, %v1920
        %v1922 = vpop.f32.mrb[0].mxu0
        %1923 = vdwg.mxu0
        %v1925 = vcombine.high %v1921, %v1921
        %v1927 = vunpack.c.l.s4 1966171168
        %v1928 = vunpack.c.0.s8 %v1927
        %v1929 = vlaneseq
        %v1930 = vshrl.u32 %v1929, 7
        %v1931 = vsub.s32 %v1928, %v1930
        %v1932 = vrot.slane %v1921, %v1931
        %v1934 = vunpack.c.l.s4 1966171168
        %v1935 = vunpack.c.0.s8 %v1934
        %v1936 = vlaneseq
        %v1937 = vshrl.u32 %v1936, 7
        %v1938 = vsub.s32 %v1935, %v1937
        %v1939 = vrot.slane %v1925, %v1938
        %v1940 = vcombine.high %v1932, %v1932
        %v1941 = vcombine.high %v1939, %v1939
        %v1943 = vunpack.c.l.s4 1966171168
        %v1944 = vunpack.c.0.s8 %v1943
        %v1945 = vlaneseq
        %v1946 = vshrl.u32 %v1945, 7
        %v1947 = vsub.s32 %v1944, %v1946
        %v1948 = vrot.slane %v1932, %v1947
        %v1950 = vunpack.c.l.s4 1966171168
        %v1951 = vunpack.c.0.s8 %v1950
        %v1952 = vlaneseq
        %v1953 = vshrl.u32 %v1952, 7
        %v1954 = vsub.s32 %v1951, %v1953
        %v1955 = vrot.slane %v1939, %v1954
        %v1957 = vunpack.c.l.s4 1966171168
        %v1958 = vunpack.c.0.s8 %v1957
        %v1959 = vlaneseq
        %v1960 = vshrl.u32 %v1959, 7
        %v1961 = vsub.s32 %v1958, %v1960
        %v1962 = vrot.slane %v1940, %v1961
        %v1964 = vunpack.c.l.s4 1966171168
        %v1965 = vunpack.c.0.s8 %v1964
        %v1966 = vlaneseq
        %v1967 = vshrl.u32 %v1966, 7
        %v1968 = vsub.s32 %v1965, %v1967
        %v1969 = vrot.slane %v1941, %v1968
        %v1970 = vcombine.high %v1948, %v1948
        %v1971 = vcombine.high %v1955, %v1955
        %v1972 = vcombine.high %v1962, %v1962
        %v1973 = vcombine.high %v1969, %v1969
        %v1974 = vlaneseq
        %v1975 = vshrl.u32 %v1974, 7
        %v1976 = vsub.s32 0, %v1975
        %v1977 = vrot.slane %v1948, %v1976
        %v1978 = vlaneseq
        %v1979 = vshrl.u32 %v1978, 7
        %v1980 = vsub.s32 0, %v1979
        %v1981 = vrot.slane %v1962, %v1980
        %v1982 = vlaneseq
        %v1983 = vshrl.u32 %v1982, 7
        %v1984 = vsub.s32 0, %v1983
        %v1985 = vrot.slane %v1970, %v1984
        %v1986 = vlaneseq
        %v1987 = vshrl.u32 %v1986, 7
        %v1988 = vsub.s32 0, %v1987
        %v1989 = vrot.slane %v1972, %v1988
        %v1990 = vlaneseq
        %v1991 = vshrl.u32 %v1990, 7
        %v1992 = vsub.s32 0, %v1991
        %v1993 = vrot.slane %v1955, %v1992
        %v1994 = vlaneseq
        %v1995 = vshrl.u32 %v1994, 7
        %v1996 = vsub.s32 0, %v1995
        %v1997 = vrot.slane %v1969, %v1996
        %v1998 = vlaneseq
        %v1999 = vshrl.u32 %v1998, 7
        %v2000 = vsub.s32 0, %v1999
        %v2001 = vrot.slane %v1971, %v2000
        %v2002 = vlaneseq
        %v2003 = vshrl.u32 %v2002, 7
        %v2004 = vsub.s32 0, %v2003
        %v2005 = vrot.slane %v1973, %v2004
        %v2006 = vcombine.low %v1977, %v1981
        %v2007 = vcombine.low %v1985, %v1989
        %v2009 = vunpack.c.l.s4 1983009808
        %v2010 = vunpack.c.0.s8 %v2009
        %v2011 = vlaneseq
        %v2012 = vshrl.u32 %v2011, 7
        %v2013 = vsub.s32 %v2010, %v2012
        %v2014 = vrot.slane %v2006, %v2013
        %v2016 = vunpack.c.l.s4 1983009808
        %v2017 = vunpack.c.0.s8 %v2016
        %v2018 = vlaneseq
        %v2019 = vshrl.u32 %v2018, 7
        %v2020 = vsub.s32 %v2017, %v2019
        %v2021 = vrot.slane %v2007, %v2020
        %v2022 = vcombine.low %v2014, %v2021
        %v2023 = vcombine.low %v1993, %v1997
        %v2024 = vcombine.low %v2001, %v2005
        %v2026 = vunpack.c.l.s4 1983009808
        %v2027 = vunpack.c.0.s8 %v2026
        %v2028 = vlaneseq
        %v2029 = vshrl.u32 %v2028, 7
        %v2030 = vsub.s32 %v2027, %v2029
        %v2031 = vrot.slane %v2023, %v2030
        %v2033 = vunpack.c.l.s4 1983009808
        %v2034 = vunpack.c.0.s8 %v2033
        %v2035 = vlaneseq
        %v2036 = vshrl.u32 %v2035, 7
        %v2037 = vsub.s32 %v2034, %v2036
        %v2038 = vrot.slane %v2024, %v2037
        %v2039 = vcombine.low %v2031, %v2038
        %s2042 = scalar_lea.vmem %s354, 32 [#allocation7]
        %2043 = vst.msk [vmem:[%s2042] sm:$0xff] %vm1465, %v2022
        %2044 = vst.msk [vmem:[%s2042 + $0x8] sm:$0xff] %vm1465, %v2039
        %s2045 = sand.u32 %s195, 1
        %s2046 = scalar_lea.sflag [#allocation4], %s2045
        %s2047 = sand.u32 %s195, 1
        %s2048 = smul.addr %s2047, 48
        %s2049 = scalar_lea.vmem [#allocation7], %s2048
        // Predicated region
        $region53: #{tpu_custom_call.1} parent=43 // pred_check
          %p2050 = pneg %p205
        $region54: #{tpu_custom_call.1} parent=43 // pred_check_branch
          %2052 = sbr.rel (%p2050) target = $region56
        $region55: #{tpu_custom_call.1} parent=43 // pred_region
          #allocation9 [shape = 'u32[6]{0}', space=smem, size = 0x18, scoped, tag = 'DMA stride descriptor']
          %s2054 = ssub.s32 768, 768
          %2055 = vsyncadd %s2046, %s2054
          %s2056 = smul.addr %s31, 2
          %s2057 = smul.addr %s30, 24
          %s2058 = sadd.s32 %s2056, %s2057
          %s2059 = smul.addr %s2058, 128
          %s2060 = scalar_lea.hbm %s6, %s2059
          %s2062 = sshll.u32 1, 14
          %s2063 = sxor.u32 4294967295, %s2062
          %s2066 = sshll.u32 7, 18
          %s2067 = sxor.u32 4294967295, %s2066
          %s2068 = sand.u32 0, %s2067
          %s2070 = sor.u32 %s2068, 0
          %s2072 = sshll.u32 3, 24
          %s2073 = sxor.u32 4294967295, %s2072
          %s2074 = sand.u32 %s2070, %s2073
          %s2076 = sor.u32 %s2074, 0
          %s2077 = sshll.u32 %s2049, 4
          %s2078 = int_to_ptr.vmem [resolvable:$true] %s2077
          %2084 = sst [smem:[#allocation9]] 256
          %s2085 = scalar_lea.smem [#allocation9], 1
          %2086 = sst [smem:[%s2085]] 1024
          %s2087 = scalar_lea.smem [#allocation9], 2
          %2088 = sst [smem:[%s2087]] 2
          %s2089 = scalar_lea.smem [#allocation9], 3
          %2090 = sst [smem:[%s2089]] 128
          %s2091 = scalar_lea.smem [#allocation9], 4
          %2092 = sst [smem:[%s2091]] 128
          %s2093 = scalar_lea.smem [#allocation9], 5
          %2094 = sst [smem:[%s2093]] 8
          %2096 = dma.general %s2078, 768, %s2060, %s2046, [#allocation8], [#allocation9], %s2076, 0
        $region56: #{tpu_custom_call.1} parent=43 // pred_fallthru
          _
      $region44: #{tpu_custom_call.1} parent=5 // pred_fallthru
        _
      %p2097 = scmp.le.s32.totalorder 2, %s21
      // Predicated region
      $region57: #{tpu_custom_call.1} parent=5 // pred_check
        %p2098 = pneg %p2097
      $region58: #{tpu_custom_call.1} parent=5 // pred_check_branch
        %2100 = sbr.rel (%p2098) target = $region60
      $region59: #{tpu_custom_call.1} parent=5 // pred_region
        %s2101 = ssub.s32 %s21, 2
        // Predicated region
        $region61: #{tpu_custom_call.1} parent=59 // pred_check
          %p2102 = pneg %p211
        $region62: #{tpu_custom_call.1} parent=59 // pred_check_branch
          %2104 = sbr.rel (%p2102) target = $region64
        $region63: #{tpu_custom_call.1} parent=59 // pred_region
          %s2105 = sand.u32 %s196, 1
          %s2106 = scalar_lea.sflag [#allocation4], %s2105
          %s2107 = sand.u32 %s196, 1
          %s2108 = smul.addr %s2107, 48
          %s2109 = scalar_lea.vmem [#allocation7], %s2108
          %2110 = dma.done %s2106, 768
        $region64: #{tpu_custom_call.1} parent=59 // pred_fallthru
          _
      $region60: #{tpu_custom_call.1} parent=5 // pred_fallthru
        _
    $region6: #{tpu_custom_call.1} parent=1 // loop_footer
      %s25 = sadd.s32 1, %s21
    $region7: #{tpu_custom_call.1} parent=1 // loop_footer_branch
      %20 = sbr.rel target = $region3
    $region8: #{tpu_custom_call.1} parent=1 // loop_exit
      _
    %2111 = vsyncpa [#allocation3], 1
    %s2112 = scalar_lea.sflag [#allocation3], 1
    %2113 = vsyncpa %s2112, 1
    %2114 = vsyncpa [#allocation6], 1
    %s2115 = scalar_lea.sflag [#allocation6], 1
    %2116 = vsyncpa %s2115, 1
    %2117 = vsyncpa [#allocation4], 1
    %s2118 = scalar_lea.sflag [#allocation4], 1
    %2119 = vsyncpa %s2118, 1

</llo_original>
